<compile_context>
chip_gen: v7x
topology: tpu7x:2x2x1
jax: 0.10.0
libtpu: 0.0.40
codegen_flags: <defaults>
</compile_context>

<pallas_src>
import jax
import jax.numpy as jnp
from jax.experimental import pallas as pl
from jax.experimental.pallas import tpu as pltpu

KSIZE = 7
PAD = 3


def convblock_kernel(x_ref, lh_ref, rh_ref, dww_ref, pwm_ref, pwb_ref, o_ref, xh_ref):
    # x_ref  : (1, TL, C)      current L-tile of x (also the residual)
    # lh_ref : (1, 1, PAD, C)  left halo rows  (zeros at sequence start)
    # rh_ref : (1, 1, PAD, C)  right halo rows (zeros at sequence end)
    # dww_ref: (7, C)          depthwise weights, tap-major, f32
    # pwm_ref: (C, C)          pointwise weight matrix (C_in, C_out), bf16
    # pwb_ref: (1, C)          fused bias: pw_b + dw_b @ pwm, f32
    # o_ref  : (1, TL, C)
    # xh_ref : (TL+6, C)       VMEM scratch: halo'd window
    TL = x_ref.shape[1]

    xc = x_ref[0]                               # (TL, C) f32 residual / center tile

    # assemble halo'd window [left(3) | center(TL) | right(3)] in VMEM scratch
    xh_ref[0:PAD, :] = lh_ref[0, 0]
    xh_ref[PAD:PAD + TL, :] = xc
    xh_ref[PAD + TL:PAD + TL + PAD, :] = rh_ref[0, 0]

    # depthwise conv along L: per-channel 7-tap FIR (VPU, f32)
    acc = xh_ref[0:TL, :] * dww_ref[0, :]
    for k in range(1, KSIZE):                   # static unrolled taps
        acc = acc + xh_ref[k:k + TL, :] * dww_ref[k, :]

    # pointwise conv (1x1) == channel matmul on the MXU: bf16 operands, f32 accumulation
    z = jnp.dot(acc.astype(jnp.bfloat16), pwm_ref[...],
                preferred_element_type=jnp.float32) + pwb_ref[0, :]

    o_ref[0] = jnp.maximum(xc + z, 0.0).astype(o_ref.dtype)


def convblock_pallas(x, dw_w, dw_b, pw_w, pw_b, *, tile_l=None):
    """x: (B, L, C) float32.  dw_w: (C,1,7)  dw_b: (C,)  pw_w: (C,C,1)  pw_b: (C,)"""
    B, L, C = x.shape

    # pick an L tile: largest multiple-of-8 divisor of L up to 512, else whole row
    if tile_l is None:
        tile_l = L
        for cand in (512, 256, 128, 64, 32, 16, 8):
            if L % cand == 0:
                tile_l = cand
                break
    assert L % tile_l == 0, "tile_l must divide L"
    TL = tile_l
    nLT = L // TL

    # one-time parameter re-layout (tiny, outside the hot path)
    dww = jnp.transpose(dw_w[:, 0, :], (1, 0)).astype(jnp.float32)        # (7, C) tap-major
    pwm_f32 = jnp.transpose(pw_w[:, :, 0], (1, 0)).astype(jnp.float32)    # (C_in, C_out)
    pwb = (pw_b.astype(jnp.float32)
           + dw_b.astype(jnp.float32) @ pwm_f32).reshape(1, C)            # fold depthwise bias
    pwm = pwm_f32.astype(jnp.bfloat16)                                    # bf16 MXU operand

    # tiny per-tile halos (3 rows each side); x itself is passed unpadded and read once
    x4 = x.reshape(B, nLT, TL, C)                                         # free view
    zhalo = jnp.zeros((B, 1, PAD, C), x.dtype)
    left = jnp.concatenate([zhalo, x4[:, :-1, TL - PAD:, :]], axis=1)     # (B, nLT, 3, C)
    right = jnp.concatenate([x4[:, 1:, :PAD, :], zhalo], axis=1)          # (B, nLT, 3, C)

    cost = pl.CostEstimate(
        flops=2 * B * L * C * (KSIZE + C),
        transcendentals=0,
        bytes_accessed=2 * B * L * C * x.dtype.itemsize + C * C * 2 + KSIZE * C * 4,
    )

    return pl.pallas_call(
        convblock_kernel,
        out_shape=jax.ShapeDtypeStruct((B, L, C), x.dtype),
        grid_spec=pltpu.PrefetchScalarGridSpec(
            num_scalar_prefetch=0,
            grid=(B, nLT),
            in_specs=[
                pl.BlockSpec((1, TL, C), lambda b, l: (b, l, 0)),        # x tile (residual too)
                pl.BlockSpec((1, 1, PAD, C), lambda b, l: (b, l, 0, 0)),  # left halo
                pl.BlockSpec((1, 1, PAD, C), lambda b, l: (b, l, 0, 0)),  # right halo
                pl.BlockSpec((KSIZE, C), lambda b, l: (0, 0)),            # depthwise weights
                pl.BlockSpec((C, C), lambda b, l: (0, 0)),                # pointwise matrix (bf16)
                pl.BlockSpec((1, C), lambda b, l: (0, 0)),                # fused bias
            ],
            out_specs=pl.BlockSpec((1, TL, C), lambda b, l: (b, l, 0)),
            scratch_shapes=[pltpu.VMEM((TL + 2 * PAD, C), jnp.float32)],
        ),
        compiler_params=pltpu.CompilerParams(
            dimension_semantics=("parallel", "parallel")),
        cost_estimate=cost,
    )(x, left, right, dww, pwm, pwb)


def convblock_ref(x, dw_w, dw_b, pw_w, pw_b):
    """Pure-JAX f32 reference matching the PyTorch forward exactly."""
    B, L, C = x.shape
    xt = jnp.transpose(x, (0, 2, 1))                       # (B, C, L)  == x.transpose(1,2)
    xp = jnp.pad(xt, ((0, 0), (0, 0), (PAD, PAD)))
    y = jnp.zeros((B, C, L), jnp.float32)
    for k in range(KSIZE):
        y = y + xp[:, :, k:k + L] * dw_w[None, :, 0, k, None]
    y = y + dw_b[None, :, None]
    z = jnp.einsum('oi,bil->bol', pw_w[:, :, 0], y) + pw_b[None, :, None]
    out = jnp.transpose(z, (0, 2, 1))                      # back to (B, L, C)
    return jnp.maximum(x + out, 0.0)


if __name__ == "__main__":
    # C=128 keeps the channel/lane axis dense (full-width vst, full MXU columns)
    B, L, C = 2, 256, 128

    key = jax.random.PRNGKey(0)
    kx, kdw, kdb, kpw, kpb = jax.random.split(key, 5)

    x = jax.random.normal(kx, (B, L, C), dtype=jnp.float32)
    dw_w = jax.random.normal(kdw, (C, 1, KSIZE), dtype=jnp.float32) * 0.1  # depthwise weight
    dw_b = jax.random.normal(kdb, (C,), dtype=jnp.float32) * 0.1           # depthwise bias
    pw_w = jax.random.normal(kpw, (C, C, 1), dtype=jnp.float32) * 0.1      # pointwise weight
    pw_b = jax.random.normal(kpb, (C,), dtype=jnp.float32) * 0.1           # pointwise bias

    ref = jax.block_until_ready(convblock_ref(x, dw_w, dw_b, pw_w, pw_b))

    # auto tile (single 256-row tile per batch row) and explicit small tiles (exercises halos)
    out_auto = jax.block_until_ready(convblock_pallas(x, dw_w, dw_b, pw_w, pw_b))
    out_tiled = jax.block_until_ready(convblock_pallas(x, dw_w, dw_b, pw_w, pw_b, tile_l=64))

    assert out_auto.shape == (B, L, C)
    # tolerance loosened vs f32 reference because the 1x1-conv matmul runs with bf16 operands
    assert jnp.allclose(out_auto, ref, atol=2e-2, rtol=2e-2), "mismatch vs reference (auto tile)"
    assert jnp.allclose(out_tiled, ref, atol=2e-2, rtol=2e-2), "mismatch vs reference (tiled)"
    print("KERNEL_OK")
</pallas_src>

<mosaic_0001>
module attributes {stable_mosaic.version = 11 : i64} {
  func.func @convblock_kernel(%arg0: i32, %arg1: i32, %arg2: memref<1x256x128xf32, #tpu.memory_space<vmem>>, %arg3: memref<1x1x3x128xf32, #tpu.memory_space<vmem>>, %arg4: memref<1x1x3x128xf32, #tpu.memory_space<vmem>>, %arg5: memref<7x128xf32, #tpu.memory_space<vmem>>, %arg6: memref<128x128xbf16, #tpu.memory_space<vmem>>, %arg7: memref<1x128xf32, #tpu.memory_space<vmem>>, %arg8: memref<1x256x128xf32, #tpu.memory_space<vmem>>, %arg9: memref<262x128xf32, #tpu.memory_space<vmem>>) attributes {dimension_semantics = [#tpu.dimension_semantics<parallel>, #tpu.dimension_semantics<parallel>], iteration_bounds = array<i64: 2, 1>, scalar_prefetch = 0 : i64, scratch_operands = 1 : i64, tpu.core_type = #tpu.core_type<tc>, window_params = [{transform_indices = @transform_0, window_bounds = array<i64: 1, 256, 128>}, {transform_indices = @transform_1, window_bounds = array<i64: 1, 1, 3, 128>}, {transform_indices = @transform_2, window_bounds = array<i64: 1, 1, 3, 128>}, {pipeline_mode = #tpu.pipeline_mode<synchronous>, transform_indices = @transform_3, window_bounds = array<i64: 7, 128>}, {pipeline_mode = #tpu.pipeline_mode<synchronous>, transform_indices = @transform_4, window_bounds = array<i64: 128, 128>}, {pipeline_mode = #tpu.pipeline_mode<synchronous>, transform_indices = @transform_5, window_bounds = array<i64: 1, 128>}, {transform_indices = @transform_6, window_bounds = array<i64: 1, 256, 128>}]} {
    %c0 = arith.constant 0 : index
    %c0_0 = arith.constant 0 : index
    %c0_1 = arith.constant 0 : index
    %0 = vector.load %arg2[%c0, %c0_0, %c0_1] : memref<1x256x128xf32, #tpu.memory_space<vmem>>, vector<1x256x128xf32>
    %1 = vector.shape_cast %0 : vector<1x256x128xf32> to vector<256x128xf32>
    %c0_2 = arith.constant 0 : index
    %c0_3 = arith.constant 0 : index
    %c0_4 = arith.constant 0 : index
    %c0_5 = arith.constant 0 : index
    %2 = vector.load %arg3[%c0_2, %c0_3, %c0_4, %c0_5] : memref<1x1x3x128xf32, #tpu.memory_space<vmem>>, vector<1x1x3x128xf32>
    %3 = vector.shape_cast %2 : vector<1x1x3x128xf32> to vector<3x128xf32>
    %c0_6 = arith.constant 0 : index
    %c0_7 = arith.constant 0 : index
    %4 = vector.load %arg9[%c0_6, %c0_7] : memref<262x128xf32, #tpu.memory_space<vmem>>, vector<3x128xf32>
    tpu.vector_store %arg9[%c0_6, %c0_7], %3 {strides = array<i32>} : memref<262x128xf32, #tpu.memory_space<vmem>>, vector<3x128xf32>,
    %c3 = arith.constant 3 : index
    %c0_8 = arith.constant 0 : index
    %5 = vector.load %arg9[%c3, %c0_8] : memref<262x128xf32, #tpu.memory_space<vmem>>, vector<256x128xf32>
    tpu.vector_store %arg9[%c3, %c0_8], %1 {strides = array<i32>} : memref<262x128xf32, #tpu.memory_space<vmem>>, vector<256x128xf32>,
    %c0_9 = arith.constant 0 : index
    %c0_10 = arith.constant 0 : index
    %c0_11 = arith.constant 0 : index
    %c0_12 = arith.constant 0 : index
    %6 = vector.load %arg4[%c0_9, %c0_10, %c0_11, %c0_12] : memref<1x1x3x128xf32, #tpu.memory_space<vmem>>, vector<1x1x3x128xf32>
    %7 = vector.shape_cast %6 : vector<1x1x3x128xf32> to vector<3x128xf32>
    %c259 = arith.constant 259 : index
    %c0_13 = arith.constant 0 : index
    %8 = vector.load %arg9[%c259, %c0_13] : memref<262x128xf32, #tpu.memory_space<vmem>>, vector<3x128xf32>
    tpu.vector_store %arg9[%c259, %c0_13], %7 {strides = array<i32>} : memref<262x128xf32, #tpu.memory_space<vmem>>, vector<3x128xf32>,
    %c0_14 = arith.constant 0 : index
    %c0_15 = arith.constant 0 : index
    %9 = vector.load %arg9[%c0_14, %c0_15] : memref<262x128xf32, #tpu.memory_space<vmem>>, vector<256x128xf32>
    %c0_16 = arith.constant 0 : index
    %c0_17 = arith.constant 0 : index
    %10 = vector.load %arg5[%c0_16, %c0_17] : memref<7x128xf32, #tpu.memory_space<vmem>>, vector<1x128xf32>
    %11 = vector.shape_cast %10 : vector<1x128xf32> to vector<128xf32>
    %12 = vector.shape_cast %11 : vector<128xf32> to vector<1x128xf32>
    %13 = vector.broadcast %12 : vector<1x128xf32> to vector<256x128xf32>
    %14 = arith.mulf %9, %13 : vector<256x128xf32>
    %c1 = arith.constant 1 : index
    %c0_18 = arith.constant 0 : index
    %15 = vector.load %arg9[%c1, %c0_18] : memref<262x128xf32, #tpu.memory_space<vmem>>, vector<256x128xf32>
    %c1_19 = arith.constant 1 : index
    %c0_20 = arith.constant 0 : index
    %16 = vector.load %arg5[%c1_19, %c0_20] : memref<7x128xf32, #tpu.memory_space<vmem>>, vector<1x128xf32>
    %17 = vector.shape_cast %16 : vector<1x128xf32> to vector<128xf32>
    %18 = vector.shape_cast %17 : vector<128xf32> to vector<1x128xf32>
    %19 = vector.broadcast %18 : vector<1x128xf32> to vector<256x128xf32>
    %20 = arith.mulf %15, %19 : vector<256x128xf32>
    %21 = arith.addf %14, %20 : vector<256x128xf32>
    %c2 = arith.constant 2 : index
    %c0_21 = arith.constant 0 : index
    %22 = vector.load %arg9[%c2, %c0_21] : memref<262x128xf32, #tpu.memory_space<vmem>>, vector<256x128xf32>
    %c2_22 = arith.constant 2 : index
    %c0_23 = arith.constant 0 : index
    %23 = vector.load %arg5[%c2_22, %c0_23] : memref<7x128xf32, #tpu.memory_space<vmem>>, vector<1x128xf32>
    %24 = vector.shape_cast %23 : vector<1x128xf32> to vector<128xf32>
    %25 = vector.shape_cast %24 : vector<128xf32> to vector<1x128xf32>
    %26 = vector.broadcast %25 : vector<1x128xf32> to vector<256x128xf32>
    %27 = arith.mulf %22, %26 : vector<256x128xf32>
    %28 = arith.addf %21, %27 : vector<256x128xf32>
    %c3_24 = arith.constant 3 : index
    %c0_25 = arith.constant 0 : index
    %29 = vector.load %arg9[%c3_24, %c0_25] : memref<262x128xf32, #tpu.memory_space<vmem>>, vector<256x128xf32>
    %c3_26 = arith.constant 3 : index
    %c0_27 = arith.constant 0 : index
    %30 = vector.load %arg5[%c3_26, %c0_27] : memref<7x128xf32, #tpu.memory_space<vmem>>, vector<1x128xf32>
    %31 = vector.shape_cast %30 : vector<1x128xf32> to vector<128xf32>
    %32 = vector.shape_cast %31 : vector<128xf32> to vector<1x128xf32>
    %33 = vector.broadcast %32 : vector<1x128xf32> to vector<256x128xf32>
    %34 = arith.mulf %29, %33 : vector<256x128xf32>
    %35 = arith.addf %28, %34 : vector<256x128xf32>
    %c4 = arith.constant 4 : index
    %c0_28 = arith.constant 0 : index
    %36 = vector.load %arg9[%c4, %c0_28] : memref<262x128xf32, #tpu.memory_space<vmem>>, vector<256x128xf32>
    %c4_29 = arith.constant 4 : index
    %c0_30 = arith.constant 0 : index
    %37 = vector.load %arg5[%c4_29, %c0_30] : memref<7x128xf32, #tpu.memory_space<vmem>>, vector<1x128xf32>
    %38 = vector.shape_cast %37 : vector<1x128xf32> to vector<128xf32>
    %39 = vector.shape_cast %38 : vector<128xf32> to vector<1x128xf32>
    %40 = vector.broadcast %39 : vector<1x128xf32> to vector<256x128xf32>
    %41 = arith.mulf %36, %40 : vector<256x128xf32>
    %42 = arith.addf %35, %41 : vector<256x128xf32>
    %c5 = arith.constant 5 : index
    %c0_31 = arith.constant 0 : index
    %43 = vector.load %arg9[%c5, %c0_31] : memref<262x128xf32, #tpu.memory_space<vmem>>, vector<256x128xf32>
    %c5_32 = arith.constant 5 : index
    %c0_33 = arith.constant 0 : index
    %44 = vector.load %arg5[%c5_32, %c0_33] : memref<7x128xf32, #tpu.memory_space<vmem>>, vector<1x128xf32>
    %45 = vector.shape_cast %44 : vector<1x128xf32> to vector<128xf32>
    %46 = vector.shape_cast %45 : vector<128xf32> to vector<1x128xf32>
    %47 = vector.broadcast %46 : vector<1x128xf32> to vector<256x128xf32>
    %48 = arith.mulf %43, %47 : vector<256x128xf32>
    %49 = arith.addf %42, %48 : vector<256x128xf32>
    %c6 = arith.constant 6 : index
    %c0_34 = arith.constant 0 : index
    %50 = vector.load %arg9[%c6, %c0_34] : memref<262x128xf32, #tpu.memory_space<vmem>>, vector<256x128xf32>
    %c6_35 = arith.constant 6 : index
    %c0_36 = arith.constant 0 : index
    %51 = vector.load %arg5[%c6_35, %c0_36] : memref<7x128xf32, #tpu.memory_space<vmem>>, vector<1x128xf32>
    %52 = vector.shape_cast %51 : vector<1x128xf32> to vector<128xf32>
    %53 = vector.shape_cast %52 : vector<128xf32> to vector<1x128xf32>
    %54 = vector.broadcast %53 : vector<1x128xf32> to vector<256x128xf32>
    %55 = arith.mulf %50, %54 : vector<256x128xf32>
    %56 = arith.addf %49, %55 : vector<256x128xf32>
    %57 = arith.truncf %56 : vector<256x128xf32> to vector<256x128xbf16>
    %c0_37 = arith.constant 0 : index
    %c0_38 = arith.constant 0 : index
    %58 = vector.load %arg6[%c0_37, %c0_38] : memref<128x128xbf16, #tpu.memory_space<vmem>>, vector<128x128xbf16>
    %cst = arith.constant dense<0.000000e+00> : vector<256x128xf32>
    %59 = tpu.matmul %57, %58, %cst {dimension_numbers = #tpu.dot_dimension_numbers<[1], [0], [0], [1], [0, 0, 1, 1], [], []>} : vector<256x128xbf16>, vector<128x128xbf16>, vector<256x128xf32> -> vector<256x128xf32>
    %c0_39 = arith.constant 0 : index
    %c0_40 = arith.constant 0 : index
    %60 = vector.load %arg7[%c0_39, %c0_40] : memref<1x128xf32, #tpu.memory_space<vmem>>, vector<1x128xf32>
    %61 = vector.shape_cast %60 : vector<1x128xf32> to vector<128xf32>
    %62 = vector.shape_cast %61 : vector<128xf32> to vector<1x128xf32>
    %63 = vector.broadcast %62 : vector<1x128xf32> to vector<256x128xf32>
    %64 = arith.addf %59, %63 : vector<256x128xf32>
    %65 = arith.addf %1, %64 : vector<256x128xf32>
    %cst_41 = arith.constant 0.000000e+00 : f32
    %66 = vector.broadcast %cst_41 : f32 to vector<256x128xf32>
    %67 = arith.maximumf %65, %66 : vector<256x128xf32>
    %c0_42 = arith.constant 0 : index
    %c0_43 = arith.constant 0 : index
    %c0_44 = arith.constant 0 : index
    %68 = vector.load %arg8[%c0_42, %c0_43, %c0_44] : memref<1x256x128xf32, #tpu.memory_space<vmem>>, vector<1x256x128xf32>
    %69 = vector.shape_cast %68 : vector<1x256x128xf32> to vector<256x128xf32>
    %70 = vector.shape_cast %67 : vector<256x128xf32> to vector<1x256x128xf32>
    tpu.vector_store %arg8[%c0_42, %c0_43, %c0_44], %70 {strides = array<i32>} : memref<1x256x128xf32, #tpu.memory_space<vmem>>, vector<1x256x128xf32>,
    return
  }
  func.func @transform_0(%arg0: i32, %arg1: i32) -> (i32, i32, i32) {
    %c0_i32 = arith.constant 0 : i32
    %c0_i32_0 = arith.constant 0 : i32
    return %arg0, %arg1, %c0_i32 : i32, i32, i32
  }
  func.func @transform_1(%arg0: i32, %arg1: i32) -> (i32, i32, i32, i32) {
    %c0_i32 = arith.constant 0 : i32
    %c0_i32_0 = arith.constant 0 : i32
    %c0_i32_1 = arith.constant 0 : i32
    return %arg0, %arg1, %c0_i32, %c0_i32_0 : i32, i32, i32, i32
  }
  func.func @transform_2(%arg0: i32, %arg1: i32) -> (i32, i32, i32, i32) {
    %c0_i32 = arith.constant 0 : i32
    %c0_i32_0 = arith.constant 0 : i32
    %c0_i32_1 = arith.constant 0 : i32
    return %arg0, %arg1, %c0_i32, %c0_i32_0 : i32, i32, i32, i32
  }
  func.func @transform_3(%arg0: i32, %arg1: i32) -> (i32, i32) {
    %c0_i32 = arith.constant 0 : i32
    %c0_i32_0 = arith.constant 0 : i32
    %c0_i32_1 = arith.constant 0 : i32
    return %c0_i32, %c0_i32_0 : i32, i32
  }
  func.func @transform_4(%arg0: i32, %arg1: i32) -> (i32, i32) {
    %c0_i32 = arith.constant 0 : i32
    %c0_i32_0 = arith.constant 0 : i32
    %c0_i32_1 = arith.constant 0 : i32
    return %c0_i32, %c0_i32_0 : i32, i32
  }
  func.func @transform_5(%arg0: i32, %arg1: i32) -> (i32, i32) {
    %c0_i32 = arith.constant 0 : i32
    %c0_i32_0 = arith.constant 0 : i32
    %c0_i32_1 = arith.constant 0 : i32
    return %c0_i32, %c0_i32_0 : i32, i32
  }
  func.func @transform_6(%arg0: i32, %arg1: i32) -> (i32, i32, i32) {
    %c0_i32 = arith.constant 0 : i32
    %c0_i32_0 = arith.constant 0 : i32
    return %arg0, %arg1, %c0_i32 : i32, i32, i32
  }
}

</mosaic_0001>

<llo_original>
// kernel: tpu_custom_call.1
$region0: #{tpu_custom_call.1}
  #allocation0 [shape = 'u32[]', space=smem, size = 0x4, offset = 0x4, fixed_abs, tag = 'smem constant byte address 0x4 - core index']
  #allocation1 [shape = 'u32[144,128]{1,0:T(1,128)}', space=vmem, size = 0x12000, scoped, tag = 'internal scratch']
  #allocation2 [shape = 'f32[262,128]{1,0:T(8,128)}', space=vmem, size = 0x21000, scoped, tag = 'scratch operand']
  %s0 = inlined_call_operand.hbm [shape: f32[2,256,128], index: 0, kind: input, shape index: {}]
  %s1 = inlined_call_operand.vmem [shape: f32[2,1,3,128], index: 1, kind: input, shape index: {}]
  %s2 = inlined_call_operand.vmem [shape: f32[2,1,3,128], index: 2, kind: input, shape index: {}]
  %s3 = inlined_call_operand.vmem [shape: f32[7,128], index: 3, kind: input, shape index: {}]
  %s4 = inlined_call_operand.hbm [shape: bf16[128,128], index: 4, kind: input, shape index: {}]
  %s5 = inlined_call_operand.vmem [shape: f32[1,128], index: 5, kind: input, shape index: {}]
  %s6 = inlined_call_operand.hbm [shape: f32[2,256,128], index: 6, kind: output, shape index: {}]
  %s7 = sld [smem:[#allocation0]]
  $region65: #{tpu_custom_call.1} parent=0
    _
  %s9 = ssub.s32 1, %s7
  %s10 = scalar_select 0, %s9, %s7
  $region1: #{tpu_custom_call.1} parent=0
    #allocation3 [shape = 'u8[262144]{0}', space=vmem, size = 0x40000, scoped, tag = 'input window, operand 0']
    #allocation4 [shape = 's32[2]{0}', space=sflag, size = 0x8, scoped, tag = 'scoped memory for tpu_custom_call.1']
    #allocation5 [shape = 's32[2]{0}', space=sflag, size = 0x8, scoped, tag = 'scoped memory for tpu_custom_call.1']
    #allocation6 [shape = 'u8[32768]{0}', space=vmem, size = 0x8000, scoped, tag = 'input window, operand 4, single buffered']
    #allocation7 [shape = 's32[1]{0}', space=sflag, size = 0x4, scoped, tag = 'scoped memory for tpu_custom_call.1']
    #allocation8 [shape = 'u8[262144]{0}', space=vmem, size = 0x40000, scoped, tag = 'output window, operand 0']
    %11 = vsyncpa [#allocation4], 0
    %s12 = scalar_lea.sflag [#allocation4], 1
    %13 = vsyncpa %s12, 0
    %14 = vsyncpa [#allocation7], 0
    %15 = vsyncpa [#allocation5], 0
    %s16 = scalar_lea.sflag [#allocation5], 1
    %17 = vsyncpa %s16, 0
    loop: start=0, step=1, limit=4
    $region2: #{tpu_custom_call.1} parent=1 // loop_pre_header
      _
    $region3: #{tpu_custom_call.1} parent=1 // loop_header
      %s19 = sphi 0, %s23
      %p20 = scmp.ge.s32.totalorder %s19, 4
      %s26 = sphi 0, %s38
      %s27 = sphi 0, %s34
      %s28 = sphi 0, %s26
      %s29 = sphi 0, %s27
      %s30 = sphi 0, %s28
      %s31 = sphi 0, %s29
      %s43 = sphi 0, %s45
      %s46 = sphi 0, %s43
      %s47 = sphi 0, %s46
      %s63 = sphi 0, %s47
      %s71 = sphi 0, %s73
      %s74 = sphi 0, %s71
      %s75 = sphi 0, %s74
      %s91 = sphi 0, %s75
      %s99 = sphi 0, %s101
      %s102 = sphi 0, %s99
      %s103 = sphi 0, %s102
      %s119 = sphi 0, %s103
      %s123 = sphi 0, %s123
      %s125 = sphi 0, %s123
      %s126 = sphi 0, %s125
      %s140 = sphi 0, %s126
      %s144 = sphi 0, %s144
      %s146 = sphi 0, %s144
      %s147 = sphi 0, %s146
      %s161 = sphi 0, %s147
      %s165 = sphi 0, %s165
      %s167 = sphi 0, %s165
      %s168 = sphi 0, %s167
      %s182 = sphi 0, %s168
      %s190 = sphi 0, %s192
      %s193 = sphi 0, %s190
      %s194 = sphi 0, %s193
      %s210 = sphi 0, %s194
    $region4: #{tpu_custom_call.1} parent=1 // loop_header_branch
      %22 = sbr.rel (%p20) target = $region8
    $region5: #{tpu_custom_call.1} parent=1 // loop_body
      %s24 = ssub.s32 %s19, 1
      %s25 = ssub.s32 %s19, 2
      %s32 = sadd.s32 1, %s27
      %p33 = scmp.ge.s32.totalorder %s32, 1
      %s34 = scalar_select %p33, 0, %s32
      %s35 = sadd.s32 1, %s26
      %s36 = scalar_select %p33, %s35, %s26
      %p37 = scmp.ge.s32.totalorder %s36, 2
      %s38 = scalar_select %p37, 0, %s36
      %s39 = ssub.s32 %s26, %s38
      %s40 = ssub.s32 %s27, %s34
      %s41 = sor.u32 %s39, %s40
      %p42 = scmp.eq.s32.totalorder %s41, 0
      %s44 = sadd.s32 %s43, 1
      %s45 = scalar_select %p42, %s43, %s44
      %p48 = pneg %p42
      %p49 = scmp.eq.s32.totalorder %s19, 1
      %p50 = por %p48, %p49
      %p51 = scmp.ne.s32.totalorder %s43, %s46
      %p52 = scmp.eq.s32.totalorder %s19, 0
      %p53 = por %p51, %p52
      %p54 = scmp.ne.s32.totalorder %s43, %s46
      %p55 = scmp.eq.s32.totalorder %s24, 1
      %p56 = por %p54, %p55
      %p57 = scmp.ne.s32.totalorder %s46, %s47
      %p58 = scmp.eq.s32.totalorder %s24, 0
      %p59 = por %p57, %p58
      %p60 = scmp.ne.s32.totalorder %s46, %s47
      %p61 = scmp.eq.s32.totalorder %s25, 1
      %p62 = por %p60, %p61
      %p64 = scmp.ne.s32.totalorder %s47, %s63
      %p65 = scmp.eq.s32.totalorder %s25, 0
      %p66 = por %p64, %p65
      %s67 = ssub.s32 %s26, %s38
      %s68 = ssub.s32 %s27, %s34
      %s69 = sor.u32 %s67, %s68
      %p70 = scmp.eq.s32.totalorder %s69, 0
      %s72 = sadd.s32 %s71, 1
      %s73 = scalar_select %p70, %s71, %s72
      %p76 = pneg %p70
      %p77 = scmp.eq.s32.totalorder %s19, 1
      %p78 = por %p76, %p77
      %p79 = scmp.ne.s32.totalorder %s71, %s74
      %p80 = scmp.eq.s32.totalorder %s19, 0
      %p81 = por %p79, %p80
      %p82 = scmp.ne.s32.totalorder %s71, %s74
      %p83 = scmp.eq.s32.totalorder %s24, 1
      %p84 = por %p82, %p83
      %p85 = scmp.ne.s32.totalorder %s74, %s75
      %p86 = scmp.eq.s32.totalorder %s24, 0
      %p87 = por %p85, %p86
      %p88 = scmp.ne.s32.totalorder %s74, %s75
      %p89 = scmp.eq.s32.totalorder %s25, 1
      %p90 = por %p88, %p89
      %p92 = scmp.ne.s32.totalorder %s75, %s91
      %p93 = scmp.eq.s32.totalorder %s25, 0
      %p94 = por %p92, %p93
      %s95 = ssub.s32 %s26, %s38
      %s96 = ssub.s32 %s27, %s34
      %s97 = sor.u32 %s95, %s96
      %p98 = scmp.eq.s32.totalorder %s97, 0
      %s100 = sadd.s32 %s99, 1
      %s101 = scalar_select %p98, %s99, %s100
      %p104 = pneg %p98
      %p105 = scmp.eq.s32.totalorder %s19, 1
      %p106 = por %p104, %p105
      %p107 = scmp.ne.s32.totalorder %s99, %s102
      %p108 = scmp.eq.s32.totalorder %s19, 0
      %p109 = por %p107, %p108
      %p110 = scmp.ne.s32.totalorder %s99, %s102
      %p111 = scmp.eq.s32.totalorder %s24, 1
      %p112 = por %p110, %p111
      %p113 = scmp.ne.s32.totalorder %s102, %s103
      %p114 = scmp.eq.s32.totalorder %s24, 0
      %p115 = por %p113, %p114
      %p116 = scmp.ne.s32.totalorder %s102, %s103
      %p117 = scmp.eq.s32.totalorder %s25, 1
      %p118 = por %p116, %p117
      %p120 = scmp.ne.s32.totalorder %s103, %s119
      %p121 = scmp.eq.s32.totalorder %s25, 0
      %p122 = por %p120, %p121
      %s124 = sadd.s32 %s123, 1
      %p127 = scmp.eq.s32.totalorder %s19, 1
      %p128 = scmp.ne.s32.totalorder %s123, %s125
      %p129 = scmp.eq.s32.totalorder %s19, 0
      %p130 = por %p128, %p129
      %p131 = scmp.ne.s32.totalorder %s123, %s125
      %p132 = scmp.eq.s32.totalorder %s24, 1
      %p133 = por %p131, %p132
      %p134 = scmp.ne.s32.totalorder %s125, %s126
      %p135 = scmp.eq.s32.totalorder %s24, 0
      %p136 = por %p134, %p135
      %p137 = scmp.ne.s32.totalorder %s125, %s126
      %p138 = scmp.eq.s32.totalorder %s25, 1
      %p139 = por %p137, %p138
      %p141 = scmp.ne.s32.totalorder %s126, %s140
      %p142 = scmp.eq.s32.totalorder %s25, 0
      %p143 = por %p141, %p142
      %s145 = sadd.s32 %s144, 1
      %p148 = scmp.eq.s32.totalorder %s19, 1
      %p149 = scmp.ne.s32.totalorder %s144, %s146
      %p150 = scmp.eq.s32.totalorder %s19, 0
      %p151 = por %p149, %p150
      %p152 = scmp.ne.s32.totalorder %s144, %s146
      %p153 = scmp.eq.s32.totalorder %s24, 1
      %p154 = por %p152, %p153
      %p155 = scmp.ne.s32.totalorder %s146, %s147
      %p156 = scmp.eq.s32.totalorder %s24, 0
      %p157 = por %p155, %p156
      %p158 = scmp.ne.s32.totalorder %s146, %s147
      %p159 = scmp.eq.s32.totalorder %s25, 1
      %p160 = por %p158, %p159
      %p162 = scmp.ne.s32.totalorder %s147, %s161
      %p163 = scmp.eq.s32.totalorder %s25, 0
      %p164 = por %p162, %p163
      %s166 = sadd.s32 %s165, 1
      %p169 = scmp.eq.s32.totalorder %s19, 1
      %p170 = scmp.ne.s32.totalorder %s165, %s167
      %p171 = scmp.eq.s32.totalorder %s19, 0
      %p172 = por %p170, %p171
      %p173 = scmp.ne.s32.totalorder %s165, %s167
      %p174 = scmp.eq.s32.totalorder %s24, 1
      %p175 = por %p173, %p174
      %p176 = scmp.ne.s32.totalorder %s167, %s168
      %p177 = scmp.eq.s32.totalorder %s24, 0
      %p178 = por %p176, %p177
      %p179 = scmp.ne.s32.totalorder %s167, %s168
      %p180 = scmp.eq.s32.totalorder %s25, 1
      %p181 = por %p179, %p180
      %p183 = scmp.ne.s32.totalorder %s168, %s182
      %p184 = scmp.eq.s32.totalorder %s25, 0
      %p185 = por %p183, %p184
      %s186 = ssub.s32 %s26, %s38
      %s187 = ssub.s32 %s27, %s34
      %s188 = sor.u32 %s186, %s187
      %p189 = scmp.eq.s32.totalorder %s188, 0
      %s191 = sadd.s32 %s190, 1
      %s192 = scalar_select %p189, %s190, %s191
      %p195 = pneg %p189
      %p196 = scmp.eq.s32.totalorder %s19, 1
      %p197 = por %p195, %p196
      %p198 = scmp.ne.s32.totalorder %s190, %s193
      %p199 = scmp.eq.s32.totalorder %s19, 0
      %p200 = por %p198, %p199
      %p201 = scmp.ne.s32.totalorder %s190, %s193
      %p202 = scmp.eq.s32.totalorder %s24, 1
      %p203 = por %p201, %p202
      %p204 = scmp.ne.s32.totalorder %s193, %s194
      %p205 = scmp.eq.s32.totalorder %s24, 0
      %p206 = por %p204, %p205
      %p207 = scmp.ne.s32.totalorder %s193, %s194
      %p208 = scmp.eq.s32.totalorder %s25, 1
      %p209 = por %p207, %p208
      %p211 = scmp.ne.s32.totalorder %s194, %s210
      %p212 = scmp.eq.s32.totalorder %s25, 0
      %p213 = por %p211, %p212
      %p214 = scmp.le.s32.totalorder 1, %s19
      %p215 = scmp.lt.s32.totalorder %s19, 3
      %p216 = pnand %p214, %p215
      %p217 = pneg %p216
      // Predicated region
      $region9: #{tpu_custom_call.1} parent=5 // pred_check
        _
      $region10: #{tpu_custom_call.1} parent=5 // pred_check_branch
        %219 = sbr.rel (%p216) target = $region12
      $region11: #{tpu_custom_call.1} parent=5 // pred_region
        %s220 = ssub.s32 %s19, 1
        // Predicated region
        $region13: #{tpu_custom_call.1} parent=11 // pred_check
          %p221 = pneg %p136
        $region14: #{tpu_custom_call.1} parent=11 // pred_check_branch
          %223 = sbr.rel (%p221) target = $region16
        $region15: #{tpu_custom_call.1} parent=11 // pred_region
          _
        $region16: #{tpu_custom_call.1} parent=11 // pred_fallthru
          _
        // Predicated region
        $region17: #{tpu_custom_call.1} parent=11 // pred_check
          %p224 = pneg %p157
        $region18: #{tpu_custom_call.1} parent=11 // pred_check_branch
          %226 = sbr.rel (%p224) target = $region20
        $region19: #{tpu_custom_call.1} parent=11 // pred_region
          %s228 = ssub.s32 1024, 1024
          %229 = vsyncadd [#allocation7], %s228
          %s230 = sshll.u32 [#allocation6], 4
          %s231 = int_to_ptr.vmem [resolvable:$true] %s230
          %236 = dma.hbm_to_vmem [thread:$0]  %s4, 1024, %s231, [#allocation7], 64, 64, 4
        $region20: #{tpu_custom_call.1} parent=11 // pred_fallthru
          _
        // Predicated region
        $region21: #{tpu_custom_call.1} parent=11 // pred_check
          %p237 = pneg %p178
        $region22: #{tpu_custom_call.1} parent=11 // pred_check_branch
          %239 = sbr.rel (%p237) target = $region24
        $region23: #{tpu_custom_call.1} parent=11 // pred_region
          _
        $region24: #{tpu_custom_call.1} parent=11 // pred_fallthru
          _
      $region12: #{tpu_custom_call.1} parent=5 // pred_fallthru
        _
      %p240 = scmp.lt.s32.totalorder %s19, 2
      // Predicated region
      $region25: #{tpu_custom_call.1} parent=5 // pred_check
        %p241 = pneg %p240
      $region26: #{tpu_custom_call.1} parent=5 // pred_check_branch
        %243 = sbr.rel (%p241) target = $region28
      $region27: #{tpu_custom_call.1} parent=5 // pred_region
        // Predicated region
        $region29: #{tpu_custom_call.1} parent=27 // pred_check
          %p244 = pneg %p53
        $region30: #{tpu_custom_call.1} parent=27 // pred_check_branch
          %246 = sbr.rel (%p244) target = $region32
        $region31: #{tpu_custom_call.1} parent=27 // pred_region
          %s247 = sand.u32 %s43, 1
          %s248 = scalar_lea.sflag [#allocation4], %s247
          %s249 = sand.u32 %s43, 1
          %s250 = smul.addr %s249, 256
          %s251 = scalar_lea.vmem [#allocation3], %s250
          %s252 = smul.u32 32, %s27
          %s254 = ssub.s32 4096, 4096
          %255 = vsyncadd %s248, %s254
          %s256 = smul.addr %s26, 32
          %s257 = sadd.s32 %s252, %s256
          %s258 = smul.addr %s257, 128
          %s259 = scalar_lea.hbm %s0, %s258
          %s260 = sshll.u32 %s251, 4
          %s261 = int_to_ptr.vmem [resolvable:$true] %s260
          %266 = dma.hbm_to_vmem [thread:$0]  %s259, 4096, %s261, %s248, 128, 128, 8
        $region32: #{tpu_custom_call.1} parent=27 // pred_fallthru
          _
        // Predicated region
        $region33: #{tpu_custom_call.1} parent=27 // pred_check
          %p267 = pneg %p81
        $region34: #{tpu_custom_call.1} parent=27 // pred_check_branch
          %269 = sbr.rel (%p267) target = $region36
        $region35: #{tpu_custom_call.1} parent=27 // pred_region
          %p270 = scmp.lt.s32.totalorder %s26, 1
          %s271 = scalar_select %p270, %s26, 1
          %p272 = scmp.lt.s32.totalorder %s27, 0
          %s273 = scalar_select %p272, %s27, 0
          %s274 = sadd.s32 %s273, %s271
          %s275 = smul.addr %s274, 4
          %s276 = scalar_lea.vmem %s1, %s275
        $region36: #{tpu_custom_call.1} parent=27 // pred_fallthru
          _
        // Predicated region
        $region37: #{tpu_custom_call.1} parent=27 // pred_check
          %p277 = pneg %p109
        $region38: #{tpu_custom_call.1} parent=27 // pred_check_branch
          %279 = sbr.rel (%p277) target = $region40
        $region39: #{tpu_custom_call.1} parent=27 // pred_region
          %p280 = scmp.lt.s32.totalorder %s26, 1
          %s281 = scalar_select %p280, %s26, 1
          %p282 = scmp.lt.s32.totalorder %s27, 0
          %s283 = scalar_select %p282, %s27, 0
          %s284 = sadd.s32 %s283, %s281
          %s285 = smul.addr %s284, 4
          %s286 = scalar_lea.vmem %s2, %s285
        $region40: #{tpu_custom_call.1} parent=27 // pred_fallthru
          _
      $region28: #{tpu_custom_call.1} parent=5 // pred_fallthru
        _
      %p287 = scmp.le.s32.totalorder 1, %s19
      %p288 = scmp.lt.s32.totalorder %s19, 3
      %p289 = pnand %p287, %p288
      %p290 = pneg %p289
      // Predicated region
      $region41: #{tpu_custom_call.1} parent=5 // pred_check
        _
      $region42: #{tpu_custom_call.1} parent=5 // pred_check_branch
        %292 = sbr.rel (%p289) target = $region44
      $region43: #{tpu_custom_call.1} parent=5 // pred_region
        %s293 = ssub.s32 %s19, 1
        %s294 = sand.u32 %s46, 1
        %s295 = scalar_lea.sflag [#allocation4], %s294
        %s296 = sand.u32 %s46, 1
        %s297 = smul.addr %s296, 256
        %s298 = scalar_lea.vmem [#allocation3], %s297
        // Predicated region
        $region45: #{tpu_custom_call.1} parent=43 // pred_check
          %p299 = pneg %p59
        $region46: #{tpu_custom_call.1} parent=43 // pred_check_branch
          %301 = sbr.rel (%p299) target = $region48
        $region47: #{tpu_custom_call.1} parent=43 // pred_region
          %302 = dma.done %s295, 4096
        $region48: #{tpu_custom_call.1} parent=43 // pred_fallthru
          _
        // Predicated region
        $region49: #{tpu_custom_call.1} parent=43 // pred_check
          %p303 = pneg %p157
        $region50: #{tpu_custom_call.1} parent=43 // pred_check_branch
          %305 = sbr.rel (%p303) target = $region52
        $region51: #{tpu_custom_call.1} parent=43 // pred_region
          %306 = dma.done [#allocation7], 1024
        $region52: #{tpu_custom_call.1} parent=43 // pred_fallthru
          _
        %s307 = sand.u32 %s46, 1
        %s308 = scalar_lea.sflag [#allocation4], %s307
        %s309 = sand.u32 %s46, 1
        %s310 = smul.addr %s309, 256
        %s311 = scalar_lea.vmem [#allocation3], %s310
        %p312 = pneg %p59
        %p313 = pneg %p56
        %p314 = scmp.lt.s32.totalorder %s28, 1
        %s315 = scalar_select %p314, %s28, 1
        %p316 = scmp.lt.s32.totalorder %s29, 0
        %s317 = scalar_select %p316, %s29, 0
        %s318 = sadd.s32 %s317, %s315
        %s319 = smul.addr %s318, 4
        %s320 = scalar_lea.vmem %s1, %s319
        %p321 = pneg %p87
        %p322 = pneg %p84
        %p323 = scmp.lt.s32.totalorder %s28, 1
        %s324 = scalar_select %p323, %s28, 1
        %p325 = scmp.lt.s32.totalorder %s29, 0
        %s326 = scalar_select %p325, %s29, 0
        %s327 = sadd.s32 %s326, %s324
        %s328 = smul.addr %s327, 4
        %s329 = scalar_lea.vmem %s2, %s328
        %p330 = pneg %p115
        %p331 = pneg %p112
        %p332 = pneg %p136
        %p333 = pneg %p133
        %p334 = pneg %p157
        %p335 = pneg %p154
        %p336 = pneg %p178
        %p337 = pneg %p175
        %p338 = pneg %p206
        %p339 = pneg %p203
        %s340 = sand.u32 %s193, 1
        %s341 = scalar_lea.sflag [#allocation5], %s340
        %s342 = sand.u32 %s193, 1
        %s343 = smul.addr %s342, 256
        %s344 = scalar_lea.vmem [#allocation8], %s343
        %s345 = smul.u32 32, %s29
        %p346 = scmp.lt.s32.totalorder %s28, 1
        %s347 = scalar_select %p346, %s28, 1
        %p348 = scmp.lt.s32.totalorder %s29, 0
        %s349 = scalar_select %p348, %s29, 0
        %s350 = sadd.s32 %s349, %s347
        %s351 = smul.addr %s350, 4
        %s352 = scalar_lea.vmem %s1, %s351
        %p353 = scmp.lt.s32.totalorder %s28, 1
        %s354 = scalar_select %p353, %s28, 1
        %p355 = scmp.lt.s32.totalorder %s29, 0
        %s356 = scalar_select %p355, %s29, 0
        %s357 = sadd.s32 %s356, %s354
        %s358 = smul.addr %s357, 4
        %s359 = scalar_lea.vmem %s2, %s358
        %s360 = smul.u32 32, %s29
        %v362 = vld [vmem:[%s298] sm:$0xff]
        %v363 = vld [vmem:[%s298 + $0x8] sm:$0xff]
        %v364 = vld [vmem:[%s298 + $0x10] sm:$0xff]
        %v365 = vld [vmem:[%s298 + $0x18] sm:$0xff]
        %v366 = vld [vmem:[%s298 + $0x20] sm:$0xff]
        %v367 = vld [vmem:[%s298 + $0x28] sm:$0xff]
        %v368 = vld [vmem:[%s298 + $0x30] sm:$0xff]
        %v369 = vld [vmem:[%s298 + $0x38] sm:$0xff]
        %v370 = vld [vmem:[%s298 + $0x40] sm:$0xff]
        %v371 = vld [vmem:[%s298 + $0x48] sm:$0xff]
        %v372 = vld [vmem:[%s298 + $0x50] sm:$0xff]
        %v373 = vld [vmem:[%s298 + $0x58] sm:$0xff]
        %v374 = vld [vmem:[%s298 + $0x60] sm:$0xff]
        %v375 = vld [vmem:[%s298 + $0x68] sm:$0xff]
        %v376 = vld [vmem:[%s298 + $0x70] sm:$0xff]
        %v377 = vld [vmem:[%s298 + $0x78] sm:$0xff]
        %v378 = vld [vmem:[%s298 + $0x80] sm:$0xff]
        %v379 = vld [vmem:[%s298 + $0x88] sm:$0xff]
        %v380 = vld [vmem:[%s298 + $0x90] sm:$0xff]
        %v381 = vld [vmem:[%s298 + $0x98] sm:$0xff]
        %v382 = vld [vmem:[%s298 + $0xa0] sm:$0xff]
        %v383 = vld [vmem:[%s298 + $0xa8] sm:$0xff]
        %v384 = vld [vmem:[%s298 + $0xb0] sm:$0xff]
        %v385 = vld [vmem:[%s298 + $0xb8] sm:$0xff]
        %v386 = vld [vmem:[%s298 + $0xc0] sm:$0xff]
        %v387 = vld [vmem:[%s298 + $0xc8] sm:$0xff]
        %v388 = vld [vmem:[%s298 + $0xd0] sm:$0xff]
        %v389 = vld [vmem:[%s298 + $0xd8] sm:$0xff]
        %v390 = vld [vmem:[%s298 + $0xe0] sm:$0xff]
        %v391 = vld [vmem:[%s298 + $0xe8] sm:$0xff]
        %v392 = vld [vmem:[%s298 + $0xf0] sm:$0xff]
        %v393 = vld [vmem:[%s298 + $0xf8] sm:$0xff]
        %v394 = vld [vmem:[%s352] sm:$0x7]
        %395 = vst [vmem:[#allocation2] sm:$0x7] %v394
        %396 = vst [vmem:[#allocation2 + $0x3] sm:$0xff] %v362
        %397 = vst [vmem:[#allocation2 + $0xb] sm:$0xff] %v363
        %398 = vst [vmem:[#allocation2 + $0x13] sm:$0xff] %v364
        %399 = vst [vmem:[#allocation2 + $0x1b] sm:$0xff] %v365
        %400 = vst [vmem:[#allocation2 + $0x23] sm:$0xff] %v366
        %401 = vst [vmem:[#allocation2 + $0x2b] sm:$0xff] %v367
        %402 = vst [vmem:[#allocation2 + $0x33] sm:$0xff] %v368
        %403 = vst [vmem:[#allocation2 + $0x3b] sm:$0xff] %v369
        %404 = vst [vmem:[#allocation2 + $0x43] sm:$0xff] %v370
        %405 = vst [vmem:[#allocation2 + $0x4b] sm:$0xff] %v371
        %406 = vst [vmem:[#allocation2 + $0x53] sm:$0xff] %v372
        %407 = vst [vmem:[#allocation2 + $0x5b] sm:$0xff] %v373
        %408 = vst [vmem:[#allocation2 + $0x63] sm:$0xff] %v374
        %409 = vst [vmem:[#allocation2 + $0x6b] sm:$0xff] %v375
        %410 = vst [vmem:[#allocation2 + $0x73] sm:$0xff] %v376
        %411 = vst [vmem:[#allocation2 + $0x7b] sm:$0xff] %v377
        %412 = vst [vmem:[#allocation2 + $0x83] sm:$0xff] %v378
        %413 = vst [vmem:[#allocation2 + $0x8b] sm:$0xff] %v379
        %414 = vst [vmem:[#allocation2 + $0x93] sm:$0xff] %v380
        %415 = vst [vmem:[#allocation2 + $0x9b] sm:$0xff] %v381
        %416 = vst [vmem:[#allocation2 + $0xa3] sm:$0xff] %v382
        %417 = vst [vmem:[#allocation2 + $0xab] sm:$0xff] %v383
        %418 = vst [vmem:[#allocation2 + $0xb3] sm:$0xff] %v384
        %419 = vst [vmem:[#allocation2 + $0xbb] sm:$0xff] %v385
        %420 = vst [vmem:[#allocation2 + $0xc3] sm:$0xff] %v386
        %421 = vst [vmem:[#allocation2 + $0xcb] sm:$0xff] %v387
        %422 = vst [vmem:[#allocation2 + $0xd3] sm:$0xff] %v388
        %423 = vst [vmem:[#allocation2 + $0xdb] sm:$0xff] %v389
        %424 = vst [vmem:[#allocation2 + $0xe3] sm:$0xff] %v390
        %425 = vst [vmem:[#allocation2 + $0xeb] sm:$0xff] %v391
        %426 = vst [vmem:[#allocation2 + $0xf3] sm:$0xff] %v392
        %427 = vst [vmem:[#allocation2 + $0xfb] sm:$0xff] %v393
        %v428 = vld [vmem:[%s359] sm:$0x7]
        %429 = vst [vmem:[#allocation2 + $0x103] sm:$0x7] %v428
        %v430 = vld [vmem:[#allocation2] sm:$0xff]
        %v431 = vld [vmem:[#allocation2 + $0x8] sm:$0xff]
        %v432 = vld [vmem:[#allocation2 + $0x10] sm:$0xff]
        %v433 = vld [vmem:[#allocation2 + $0x18] sm:$0xff]
        %v434 = vld [vmem:[#allocation2 + $0x20] sm:$0xff]
        %v435 = vld [vmem:[#allocation2 + $0x28] sm:$0xff]
        %v436 = vld [vmem:[#allocation2 + $0x30] sm:$0xff]
        %v437 = vld [vmem:[#allocation2 + $0x38] sm:$0xff]
        %v438 = vld [vmem:[#allocation2 + $0x40] sm:$0xff]
        %v439 = vld [vmem:[#allocation2 + $0x48] sm:$0xff]
        %v440 = vld [vmem:[#allocation2 + $0x50] sm:$0xff]
        %v441 = vld [vmem:[#allocation2 + $0x58] sm:$0xff]
        %v442 = vld [vmem:[#allocation2 + $0x60] sm:$0xff]
        %v443 = vld [vmem:[#allocation2 + $0x68] sm:$0xff]
        %v444 = vld [vmem:[#allocation2 + $0x70] sm:$0xff]
        %v445 = vld [vmem:[#allocation2 + $0x78] sm:$0xff]
        %v446 = vld [vmem:[#allocation2 + $0x80] sm:$0xff]
        %v447 = vld [vmem:[#allocation2 + $0x88] sm:$0xff]
        %v448 = vld [vmem:[#allocation2 + $0x90] sm:$0xff]
        %v449 = vld [vmem:[#allocation2 + $0x98] sm:$0xff]
        %v450 = vld [vmem:[#allocation2 + $0xa0] sm:$0xff]
        %v451 = vld [vmem:[#allocation2 + $0xa8] sm:$0xff]
        %v452 = vld [vmem:[#allocation2 + $0xb0] sm:$0xff]
        %v453 = vld [vmem:[#allocation2 + $0xb8] sm:$0xff]
        %v454 = vld [vmem:[#allocation2 + $0xc0] sm:$0xff]
        %v455 = vld [vmem:[#allocation2 + $0xc8] sm:$0xff]
        %v456 = vld [vmem:[#allocation2 + $0xd0] sm:$0xff]
        %v457 = vld [vmem:[#allocation2 + $0xd8] sm:$0xff]
        %v458 = vld [vmem:[#allocation2 + $0xe0] sm:$0xff]
        %v459 = vld [vmem:[#allocation2 + $0xe8] sm:$0xff]
        %v460 = vld [vmem:[#allocation2 + $0xf0] sm:$0xff]
        %v461 = vld [vmem:[#allocation2 + $0xf8] sm:$0xff]
        %v462 = vld [vmem:[%s3] sm:$0x1]
        %v463 = vlaneseq
        %v464 = vshrl.u32 %v463, 7
        %v465 = vsub.s32 0, %v464
        %v466 = vrot.slane %v462, %v465
        %v467 = vmul.f32 %v430, %v466
        %v468 = vmul.f32 %v431, %v466
        %v469 = vmul.f32 %v432, %v466
        %v470 = vmul.f32 %v433, %v466
        %v471 = vmul.f32 %v434, %v466
        %v472 = vmul.f32 %v435, %v466
        %v473 = vmul.f32 %v436, %v466
        %v474 = vmul.f32 %v437, %v466
        %v475 = vmul.f32 %v438, %v466
        %v476 = vmul.f32 %v439, %v466
        %v477 = vmul.f32 %v440, %v466
        %v478 = vmul.f32 %v441, %v466
        %v479 = vmul.f32 %v442, %v466
        %v480 = vmul.f32 %v443, %v466
        %v481 = vmul.f32 %v444, %v466
        %v482 = vmul.f32 %v445, %v466
        %v483 = vmul.f32 %v446, %v466
        %v484 = vmul.f32 %v447, %v466
        %v485 = vmul.f32 %v448, %v466
        %v486 = vmul.f32 %v449, %v466
        %v487 = vmul.f32 %v450, %v466
        %v488 = vmul.f32 %v451, %v466
        %v489 = vmul.f32 %v452, %v466
        %v490 = vmul.f32 %v453, %v466
        %v491 = vmul.f32 %v454, %v466
        %v492 = vmul.f32 %v455, %v466
        %v493 = vmul.f32 %v456, %v466
        %v494 = vmul.f32 %v457, %v466
        %v495 = vmul.f32 %v458, %v466
        %v496 = vmul.f32 %v459, %v466
        %v497 = vmul.f32 %v460, %v466
        %v498 = vmul.f32 %v461, %v466
        %v499 = vld [vmem:[#allocation2 + $0x1] sm:$0xff]
        %v500 = vld [vmem:[#allocation2 + $0x9] sm:$0xff]
        %v501 = vld [vmem:[#allocation2 + $0x11] sm:$0xff]
        %v502 = vld [vmem:[#allocation2 + $0x19] sm:$0xff]
        %v503 = vld [vmem:[#allocation2 + $0x21] sm:$0xff]
        %v504 = vld [vmem:[#allocation2 + $0x29] sm:$0xff]
        %v505 = vld [vmem:[#allocation2 + $0x31] sm:$0xff]
        %v506 = vld [vmem:[#allocation2 + $0x39] sm:$0xff]
        %v507 = vld [vmem:[#allocation2 + $0x41] sm:$0xff]
        %v508 = vld [vmem:[#allocation2 + $0x49] sm:$0xff]
        %v509 = vld [vmem:[#allocation2 + $0x51] sm:$0xff]
        %v510 = vld [vmem:[#allocation2 + $0x59] sm:$0xff]
        %v511 = vld [vmem:[#allocation2 + $0x61] sm:$0xff]
        %v512 = vld [vmem:[#allocation2 + $0x69] sm:$0xff]
        %v513 = vld [vmem:[#allocation2 + $0x71] sm:$0xff]
        %v514 = vld [vmem:[#allocation2 + $0x79] sm:$0xff]
        %v515 = vld [vmem:[#allocation2 + $0x81] sm:$0xff]
        %v516 = vld [vmem:[#allocation2 + $0x89] sm:$0xff]
        %v517 = vld [vmem:[#allocation2 + $0x91] sm:$0xff]
        %v518 = vld [vmem:[#allocation2 + $0x99] sm:$0xff]
        %v519 = vld [vmem:[#allocation2 + $0xa1] sm:$0xff]
        %v520 = vld [vmem:[#allocation2 + $0xa9] sm:$0xff]
        %v521 = vld [vmem:[#allocation2 + $0xb1] sm:$0xff]
        %v522 = vld [vmem:[#allocation2 + $0xb9] sm:$0xff]
        %v523 = vld [vmem:[#allocation2 + $0xc1] sm:$0xff]
        %v524 = vld [vmem:[#allocation2 + $0xc9] sm:$0xff]
        %v525 = vld [vmem:[#allocation2 + $0xd1] sm:$0xff]
        %v526 = vld [vmem:[#allocation2 + $0xd9] sm:$0xff]
        %v527 = vld [vmem:[#allocation2 + $0xe1] sm:$0xff]
        %v528 = vld [vmem:[#allocation2 + $0xe9] sm:$0xff]
        %v529 = vld [vmem:[#allocation2 + $0xf1] sm:$0xff]
        %v530 = vld [vmem:[#allocation2 + $0xf9] sm:$0xff]
        %v531 = vld [vmem:[%s3 + $0x1] sm:$0x1]
        %v532 = vlaneseq
        %v533 = vshrl.u32 %v532, 7
        %v534 = vsub.s32 0, %v533
        %v535 = vrot.slane %v531, %v534
        %v536 = vmul.f32 %v499, %v535
        %v537 = vmul.f32 %v500, %v535
        %v538 = vmul.f32 %v501, %v535
        %v539 = vmul.f32 %v502, %v535
        %v540 = vmul.f32 %v503, %v535
        %v541 = vmul.f32 %v504, %v535
        %v542 = vmul.f32 %v505, %v535
        %v543 = vmul.f32 %v506, %v535
        %v544 = vmul.f32 %v507, %v535
        %v545 = vmul.f32 %v508, %v535
        %v546 = vmul.f32 %v509, %v535
        %v547 = vmul.f32 %v510, %v535
        %v548 = vmul.f32 %v511, %v535
        %v549 = vmul.f32 %v512, %v535
        %v550 = vmul.f32 %v513, %v535
        %v551 = vmul.f32 %v514, %v535
        %v552 = vmul.f32 %v515, %v535
        %v553 = vmul.f32 %v516, %v535
        %v554 = vmul.f32 %v517, %v535
        %v555 = vmul.f32 %v518, %v535
        %v556 = vmul.f32 %v519, %v535
        %v557 = vmul.f32 %v520, %v535
        %v558 = vmul.f32 %v521, %v535
        %v559 = vmul.f32 %v522, %v535
        %v560 = vmul.f32 %v523, %v535
        %v561 = vmul.f32 %v524, %v535
        %v562 = vmul.f32 %v525, %v535
        %v563 = vmul.f32 %v526, %v535
        %v564 = vmul.f32 %v527, %v535
        %v565 = vmul.f32 %v528, %v535
        %v566 = vmul.f32 %v529, %v535
        %v567 = vmul.f32 %v530, %v535
        %v568 = vadd.f32 %v467, %v536
        %v569 = vadd.f32 %v468, %v537
        %v570 = vadd.f32 %v469, %v538
        %v571 = vadd.f32 %v470, %v539
        %v572 = vadd.f32 %v471, %v540
        %v573 = vadd.f32 %v472, %v541
        %v574 = vadd.f32 %v473, %v542
        %v575 = vadd.f32 %v474, %v543
        %v576 = vadd.f32 %v475, %v544
        %v577 = vadd.f32 %v476, %v545
        %v578 = vadd.f32 %v477, %v546
        %v579 = vadd.f32 %v478, %v547
        %v580 = vadd.f32 %v479, %v548
        %v581 = vadd.f32 %v480, %v549
        %v582 = vadd.f32 %v481, %v550
        %v583 = vadd.f32 %v482, %v551
        %v584 = vadd.f32 %v483, %v552
        %v585 = vadd.f32 %v484, %v553
        %v586 = vadd.f32 %v485, %v554
        %v587 = vadd.f32 %v486, %v555
        %v588 = vadd.f32 %v487, %v556
        %v589 = vadd.f32 %v488, %v557
        %v590 = vadd.f32 %v489, %v558
        %v591 = vadd.f32 %v490, %v559
        %v592 = vadd.f32 %v491, %v560
        %v593 = vadd.f32 %v492, %v561
        %v594 = vadd.f32 %v493, %v562
        %v595 = vadd.f32 %v494, %v563
        %v596 = vadd.f32 %v495, %v564
        %v597 = vadd.f32 %v496, %v565
        %v598 = vadd.f32 %v497, %v566
        %v599 = vadd.f32 %v498, %v567
        %v600 = vld [vmem:[#allocation2 + $0x2] sm:$0xff]
        %v601 = vld [vmem:[#allocation2 + $0xa] sm:$0xff]
        %v602 = vld [vmem:[#allocation2 + $0x12] sm:$0xff]
        %v603 = vld [vmem:[#allocation2 + $0x1a] sm:$0xff]
        %v604 = vld [vmem:[#allocation2 + $0x22] sm:$0xff]
        %v605 = vld [vmem:[#allocation2 + $0x2a] sm:$0xff]
        %v606 = vld [vmem:[#allocation2 + $0x32] sm:$0xff]
        %v607 = vld [vmem:[#allocation2 + $0x3a] sm:$0xff]
        %v608 = vld [vmem:[#allocation2 + $0x42] sm:$0xff]
        %v609 = vld [vmem:[#allocation2 + $0x4a] sm:$0xff]
        %v610 = vld [vmem:[#allocation2 + $0x52] sm:$0xff]
        %v611 = vld [vmem:[#allocation2 + $0x5a] sm:$0xff]
        %v612 = vld [vmem:[#allocation2 + $0x62] sm:$0xff]
        %v613 = vld [vmem:[#allocation2 + $0x6a] sm:$0xff]
        %v614 = vld [vmem:[#allocation2 + $0x72] sm:$0xff]
        %v615 = vld [vmem:[#allocation2 + $0x7a] sm:$0xff]
        %v616 = vld [vmem:[#allocation2 + $0x82] sm:$0xff]
        %v617 = vld [vmem:[#allocation2 + $0x8a] sm:$0xff]
        %v618 = vld [vmem:[#allocation2 + $0x92] sm:$0xff]
        %v619 = vld [vmem:[#allocation2 + $0x9a] sm:$0xff]
        %v620 = vld [vmem:[#allocation2 + $0xa2] sm:$0xff]
        %v621 = vld [vmem:[#allocation2 + $0xaa] sm:$0xff]
        %v622 = vld [vmem:[#allocation2 + $0xb2] sm:$0xff]
        %v623 = vld [vmem:[#allocation2 + $0xba] sm:$0xff]
        %v624 = vld [vmem:[#allocation2 + $0xc2] sm:$0xff]
        %v625 = vld [vmem:[#allocation2 + $0xca] sm:$0xff]
        %v626 = vld [vmem:[#allocation2 + $0xd2] sm:$0xff]
        %v627 = vld [vmem:[#allocation2 + $0xda] sm:$0xff]
        %v628 = vld [vmem:[#allocation2 + $0xe2] sm:$0xff]
        %v629 = vld [vmem:[#allocation2 + $0xea] sm:$0xff]
        %v630 = vld [vmem:[#allocation2 + $0xf2] sm:$0xff]
        %v631 = vld [vmem:[#allocation2 + $0xfa] sm:$0xff]
        %v632 = vld [vmem:[%s3 + $0x2] sm:$0x1]
        %v633 = vlaneseq
        %v634 = vshrl.u32 %v633, 7
        %v635 = vsub.s32 0, %v634
        %v636 = vrot.slane %v632, %v635
        %v637 = vmul.f32 %v600, %v636
        %v638 = vmul.f32 %v601, %v636
        %v639 = vmul.f32 %v602, %v636
        %v640 = vmul.f32 %v603, %v636
        %v641 = vmul.f32 %v604, %v636
        %v642 = vmul.f32 %v605, %v636
        %v643 = vmul.f32 %v606, %v636
        %v644 = vmul.f32 %v607, %v636
        %v645 = vmul.f32 %v608, %v636
        %v646 = vmul.f32 %v609, %v636
        %v647 = vmul.f32 %v610, %v636
        %v648 = vmul.f32 %v611, %v636
        %v649 = vmul.f32 %v612, %v636
        %v650 = vmul.f32 %v613, %v636
        %v651 = vmul.f32 %v614, %v636
        %v652 = vmul.f32 %v615, %v636
        %v653 = vmul.f32 %v616, %v636
        %v654 = vmul.f32 %v617, %v636
        %v655 = vmul.f32 %v618, %v636
        %v656 = vmul.f32 %v619, %v636
        %v657 = vmul.f32 %v620, %v636
        %v658 = vmul.f32 %v621, %v636
        %v659 = vmul.f32 %v622, %v636
        %v660 = vmul.f32 %v623, %v636
        %v661 = vmul.f32 %v624, %v636
        %v662 = vmul.f32 %v625, %v636
        %v663 = vmul.f32 %v626, %v636
        %v664 = vmul.f32 %v627, %v636
        %v665 = vmul.f32 %v628, %v636
        %v666 = vmul.f32 %v629, %v636
        %v667 = vmul.f32 %v630, %v636
        %v668 = vmul.f32 %v631, %v636
        %v669 = vadd.f32 %v568, %v637
        %v670 = vadd.f32 %v569, %v638
        %v671 = vadd.f32 %v570, %v639
        %v672 = vadd.f32 %v571, %v640
        %v673 = vadd.f32 %v572, %v641
        %v674 = vadd.f32 %v573, %v642
        %v675 = vadd.f32 %v574, %v643
        %v676 = vadd.f32 %v575, %v644
        %v677 = vadd.f32 %v576, %v645
        %v678 = vadd.f32 %v577, %v646
        %v679 = vadd.f32 %v578, %v647
        %v680 = vadd.f32 %v579, %v648
        %v681 = vadd.f32 %v580, %v649
        %v682 = vadd.f32 %v581, %v650
        %v683 = vadd.f32 %v582, %v651
        %v684 = vadd.f32 %v583, %v652
        %v685 = vadd.f32 %v584, %v653
        %v686 = vadd.f32 %v585, %v654
        %v687 = vadd.f32 %v586, %v655
        %v688 = vadd.f32 %v587, %v656
        %v689 = vadd.f32 %v588, %v657
        %v690 = vadd.f32 %v589, %v658
        %v691 = vadd.f32 %v590, %v659
        %v692 = vadd.f32 %v591, %v660
        %v693 = vadd.f32 %v592, %v661
        %v694 = vadd.f32 %v593, %v662
        %v695 = vadd.f32 %v594, %v663
        %v696 = vadd.f32 %v595, %v664
        %v697 = vadd.f32 %v596, %v665
        %v698 = vadd.f32 %v597, %v666
        %v699 = vadd.f32 %v598, %v667
        %v700 = vadd.f32 %v599, %v668
        %v701 = vld [vmem:[#allocation2 + $0x3] sm:$0xff]
        %v702 = vld [vmem:[#allocation2 + $0xb] sm:$0xff]
        %v703 = vld [vmem:[#allocation2 + $0x13] sm:$0xff]
        %v704 = vld [vmem:[#allocation2 + $0x1b] sm:$0xff]
        %v705 = vld [vmem:[#allocation2 + $0x23] sm:$0xff]
        %v706 = vld [vmem:[#allocation2 + $0x2b] sm:$0xff]
        %v707 = vld [vmem:[#allocation2 + $0x33] sm:$0xff]
        %v708 = vld [vmem:[#allocation2 + $0x3b] sm:$0xff]
        %v709 = vld [vmem:[#allocation2 + $0x43] sm:$0xff]
        %v710 = vld [vmem:[#allocation2 + $0x4b] sm:$0xff]
        %v711 = vld [vmem:[#allocation2 + $0x53] sm:$0xff]
        %v712 = vld [vmem:[#allocation2 + $0x5b] sm:$0xff]
        %v713 = vld [vmem:[#allocation2 + $0x63] sm:$0xff]
        %v714 = vld [vmem:[#allocation2 + $0x6b] sm:$0xff]
        %v715 = vld [vmem:[#allocation2 + $0x73] sm:$0xff]
        %v716 = vld [vmem:[#allocation2 + $0x7b] sm:$0xff]
        %v717 = vld [vmem:[#allocation2 + $0x83] sm:$0xff]
        %v718 = vld [vmem:[#allocation2 + $0x8b] sm:$0xff]
        %v719 = vld [vmem:[#allocation2 + $0x93] sm:$0xff]
        %v720 = vld [vmem:[#allocation2 + $0x9b] sm:$0xff]
        %v721 = vld [vmem:[#allocation2 + $0xa3] sm:$0xff]
        %v722 = vld [vmem:[#allocation2 + $0xab] sm:$0xff]
        %v723 = vld [vmem:[#allocation2 + $0xb3] sm:$0xff]
        %v724 = vld [vmem:[#allocation2 + $0xbb] sm:$0xff]
        %v725 = vld [vmem:[#allocation2 + $0xc3] sm:$0xff]
        %v726 = vld [vmem:[#allocation2 + $0xcb] sm:$0xff]
        %v727 = vld [vmem:[#allocation2 + $0xd3] sm:$0xff]
        %v728 = vld [vmem:[#allocation2 + $0xdb] sm:$0xff]
        %v729 = vld [vmem:[#allocation2 + $0xe3] sm:$0xff]
        %v730 = vld [vmem:[#allocation2 + $0xeb] sm:$0xff]
        %v731 = vld [vmem:[#allocation2 + $0xf3] sm:$0xff]
        %v732 = vld [vmem:[#allocation2 + $0xfb] sm:$0xff]
        %v733 = vld [vmem:[%s3 + $0x3] sm:$0x1]
        %v734 = vlaneseq
        %v735 = vshrl.u32 %v734, 7
        %v736 = vsub.s32 0, %v735
        %v737 = vrot.slane %v733, %v736
        %v738 = vmul.f32 %v701, %v737
        %v739 = vmul.f32 %v702, %v737
        %v740 = vmul.f32 %v703, %v737
        %v741 = vmul.f32 %v704, %v737
        %v742 = vmul.f32 %v705, %v737
        %v743 = vmul.f32 %v706, %v737
        %v744 = vmul.f32 %v707, %v737
        %v745 = vmul.f32 %v708, %v737
        %v746 = vmul.f32 %v709, %v737
        %v747 = vmul.f32 %v710, %v737
        %v748 = vmul.f32 %v711, %v737
        %v749 = vmul.f32 %v712, %v737
        %v750 = vmul.f32 %v713, %v737
        %v751 = vmul.f32 %v714, %v737
        %v752 = vmul.f32 %v715, %v737
        %v753 = vmul.f32 %v716, %v737
        %v754 = vmul.f32 %v717, %v737
        %v755 = vmul.f32 %v718, %v737
        %v756 = vmul.f32 %v719, %v737
        %v757 = vmul.f32 %v720, %v737
        %v758 = vmul.f32 %v721, %v737
        %v759 = vmul.f32 %v722, %v737
        %v760 = vmul.f32 %v723, %v737
        %v761 = vmul.f32 %v724, %v737
        %v762 = vmul.f32 %v725, %v737
        %v763 = vmul.f32 %v726, %v737
        %v764 = vmul.f32 %v727, %v737
        %v765 = vmul.f32 %v728, %v737
        %v766 = vmul.f32 %v729, %v737
        %v767 = vmul.f32 %v730, %v737
        %v768 = vmul.f32 %v731, %v737
        %v769 = vmul.f32 %v732, %v737
        %v770 = vadd.f32 %v669, %v738
        %v771 = vadd.f32 %v670, %v739
        %v772 = vadd.f32 %v671, %v740
        %v773 = vadd.f32 %v672, %v741
        %v774 = vadd.f32 %v673, %v742
        %v775 = vadd.f32 %v674, %v743
        %v776 = vadd.f32 %v675, %v744
        %v777 = vadd.f32 %v676, %v745
        %v778 = vadd.f32 %v677, %v746
        %v779 = vadd.f32 %v678, %v747
        %v780 = vadd.f32 %v679, %v748
        %v781 = vadd.f32 %v680, %v749
        %v782 = vadd.f32 %v681, %v750
        %v783 = vadd.f32 %v682, %v751
        %v784 = vadd.f32 %v683, %v752
        %v785 = vadd.f32 %v684, %v753
        %v786 = vadd.f32 %v685, %v754
        %v787 = vadd.f32 %v686, %v755
        %v788 = vadd.f32 %v687, %v756
        %v789 = vadd.f32 %v688, %v757
        %v790 = vadd.f32 %v689, %v758
        %v791 = vadd.f32 %v690, %v759
        %v792 = vadd.f32 %v691, %v760
        %v793 = vadd.f32 %v692, %v761
        %v794 = vadd.f32 %v693, %v762
        %v795 = vadd.f32 %v694, %v763
        %v796 = vadd.f32 %v695, %v764
        %v797 = vadd.f32 %v696, %v765
        %v798 = vadd.f32 %v697, %v766
        %v799 = vadd.f32 %v698, %v767
        %v800 = vadd.f32 %v699, %v768
        %v801 = vadd.f32 %v700, %v769
        %v802 = vld [vmem:[#allocation2 + $0x4] sm:$0xff]
        %v803 = vld [vmem:[#allocation2 + $0xc] sm:$0xff]
        %v804 = vld [vmem:[#allocation2 + $0x14] sm:$0xff]
        %v805 = vld [vmem:[#allocation2 + $0x1c] sm:$0xff]
        %v806 = vld [vmem:[#allocation2 + $0x24] sm:$0xff]
        %v807 = vld [vmem:[#allocation2 + $0x2c] sm:$0xff]
        %v808 = vld [vmem:[#allocation2 + $0x34] sm:$0xff]
        %v809 = vld [vmem:[#allocation2 + $0x3c] sm:$0xff]
        %v810 = vld [vmem:[#allocation2 + $0x44] sm:$0xff]
        %v811 = vld [vmem:[#allocation2 + $0x4c] sm:$0xff]
        %v812 = vld [vmem:[#allocation2 + $0x54] sm:$0xff]
        %v813 = vld [vmem:[#allocation2 + $0x5c] sm:$0xff]
        %v814 = vld [vmem:[#allocation2 + $0x64] sm:$0xff]
        %v815 = vld [vmem:[#allocation2 + $0x6c] sm:$0xff]
        %v816 = vld [vmem:[#allocation2 + $0x74] sm:$0xff]
        %v817 = vld [vmem:[#allocation2 + $0x7c] sm:$0xff]
        %v818 = vld [vmem:[#allocation2 + $0x84] sm:$0xff]
        %v819 = vld [vmem:[#allocation2 + $0x8c] sm:$0xff]
        %v820 = vld [vmem:[#allocation2 + $0x94] sm:$0xff]
        %v821 = vld [vmem:[#allocation2 + $0x9c] sm:$0xff]
        %v822 = vld [vmem:[#allocation2 + $0xa4] sm:$0xff]
        %v823 = vld [vmem:[#allocation2 + $0xac] sm:$0xff]
        %v824 = vld [vmem:[#allocation2 + $0xb4] sm:$0xff]
        %v825 = vld [vmem:[#allocation2 + $0xbc] sm:$0xff]
        %v826 = vld [vmem:[#allocation2 + $0xc4] sm:$0xff]
        %v827 = vld [vmem:[#allocation2 + $0xcc] sm:$0xff]
        %v828 = vld [vmem:[#allocation2 + $0xd4] sm:$0xff]
        %v829 = vld [vmem:[#allocation2 + $0xdc] sm:$0xff]
        %v830 = vld [vmem:[#allocation2 + $0xe4] sm:$0xff]
        %v831 = vld [vmem:[#allocation2 + $0xec] sm:$0xff]
        %v832 = vld [vmem:[#allocation2 + $0xf4] sm:$0xff]
        %v833 = vld [vmem:[#allocation2 + $0xfc] sm:$0xff]
        %v834 = vld [vmem:[%s3 + $0x4] sm:$0x1]
        %v835 = vlaneseq
        %v836 = vshrl.u32 %v835, 7
        %v837 = vsub.s32 0, %v836
        %v838 = vrot.slane %v834, %v837
        %v839 = vmul.f32 %v802, %v838
        %v840 = vmul.f32 %v803, %v838
        %v841 = vmul.f32 %v804, %v838
        %v842 = vmul.f32 %v805, %v838
        %v843 = vmul.f32 %v806, %v838
        %v844 = vmul.f32 %v807, %v838
        %v845 = vmul.f32 %v808, %v838
        %v846 = vmul.f32 %v809, %v838
        %v847 = vmul.f32 %v810, %v838
        %v848 = vmul.f32 %v811, %v838
        %v849 = vmul.f32 %v812, %v838
        %v850 = vmul.f32 %v813, %v838
        %v851 = vmul.f32 %v814, %v838
        %v852 = vmul.f32 %v815, %v838
        %v853 = vmul.f32 %v816, %v838
        %v854 = vmul.f32 %v817, %v838
        %v855 = vmul.f32 %v818, %v838
        %v856 = vmul.f32 %v819, %v838
        %v857 = vmul.f32 %v820, %v838
        %v858 = vmul.f32 %v821, %v838
        %v859 = vmul.f32 %v822, %v838
        %v860 = vmul.f32 %v823, %v838
        %v861 = vmul.f32 %v824, %v838
        %v862 = vmul.f32 %v825, %v838
        %v863 = vmul.f32 %v826, %v838
        %v864 = vmul.f32 %v827, %v838
        %v865 = vmul.f32 %v828, %v838
        %v866 = vmul.f32 %v829, %v838
        %v867 = vmul.f32 %v830, %v838
        %v868 = vmul.f32 %v831, %v838
        %v869 = vmul.f32 %v832, %v838
        %v870 = vmul.f32 %v833, %v838
        %v871 = vadd.f32 %v770, %v839
        %v872 = vadd.f32 %v771, %v840
        %v873 = vadd.f32 %v772, %v841
        %v874 = vadd.f32 %v773, %v842
        %v875 = vadd.f32 %v774, %v843
        %v876 = vadd.f32 %v775, %v844
        %v877 = vadd.f32 %v776, %v845
        %v878 = vadd.f32 %v777, %v846
        %v879 = vadd.f32 %v778, %v847
        %v880 = vadd.f32 %v779, %v848
        %v881 = vadd.f32 %v780, %v849
        %v882 = vadd.f32 %v781, %v850
        %v883 = vadd.f32 %v782, %v851
        %v884 = vadd.f32 %v783, %v852
        %v885 = vadd.f32 %v784, %v853
        %v886 = vadd.f32 %v785, %v854
        %v887 = vadd.f32 %v786, %v855
        %v888 = vadd.f32 %v787, %v856
        %v889 = vadd.f32 %v788, %v857
        %v890 = vadd.f32 %v789, %v858
        %v891 = vadd.f32 %v790, %v859
        %v892 = vadd.f32 %v791, %v860
        %v893 = vadd.f32 %v792, %v861
        %v894 = vadd.f32 %v793, %v862
        %v895 = vadd.f32 %v794, %v863
        %v896 = vadd.f32 %v795, %v864
        %v897 = vadd.f32 %v796, %v865
        %v898 = vadd.f32 %v797, %v866
        %v899 = vadd.f32 %v798, %v867
        %v900 = vadd.f32 %v799, %v868
        %v901 = vadd.f32 %v800, %v869
        %v902 = vadd.f32 %v801, %v870
        %v903 = vld [vmem:[#allocation2 + $0x5] sm:$0xff]
        %v904 = vld [vmem:[#allocation2 + $0xd] sm:$0xff]
        %v905 = vld [vmem:[#allocation2 + $0x15] sm:$0xff]
        %v906 = vld [vmem:[#allocation2 + $0x1d] sm:$0xff]
        %v907 = vld [vmem:[#allocation2 + $0x25] sm:$0xff]
        %v908 = vld [vmem:[#allocation2 + $0x2d] sm:$0xff]
        %v909 = vld [vmem:[#allocation2 + $0x35] sm:$0xff]
        %v910 = vld [vmem:[#allocation2 + $0x3d] sm:$0xff]
        %v911 = vld [vmem:[#allocation2 + $0x45] sm:$0xff]
        %v912 = vld [vmem:[#allocation2 + $0x4d] sm:$0xff]
        %v913 = vld [vmem:[#allocation2 + $0x55] sm:$0xff]
        %v914 = vld [vmem:[#allocation2 + $0x5d] sm:$0xff]
        %v915 = vld [vmem:[#allocation2 + $0x65] sm:$0xff]
        %v916 = vld [vmem:[#allocation2 + $0x6d] sm:$0xff]
        %v917 = vld [vmem:[#allocation2 + $0x75] sm:$0xff]
        %v918 = vld [vmem:[#allocation2 + $0x7d] sm:$0xff]
        %v919 = vld [vmem:[#allocation2 + $0x85] sm:$0xff]
        %v920 = vld [vmem:[#allocation2 + $0x8d] sm:$0xff]
        %v921 = vld [vmem:[#allocation2 + $0x95] sm:$0xff]
        %v922 = vld [vmem:[#allocation2 + $0x9d] sm:$0xff]
        %v923 = vld [vmem:[#allocation2 + $0xa5] sm:$0xff]
        %v924 = vld [vmem:[#allocation2 + $0xad] sm:$0xff]
        %v925 = vld [vmem:[#allocation2 + $0xb5] sm:$0xff]
        %v926 = vld [vmem:[#allocation2 + $0xbd] sm:$0xff]
        %v927 = vld [vmem:[#allocation2 + $0xc5] sm:$0xff]
        %v928 = vld [vmem:[#allocation2 + $0xcd] sm:$0xff]
        %v929 = vld [vmem:[#allocation2 + $0xd5] sm:$0xff]
        %v930 = vld [vmem:[#allocation2 + $0xdd] sm:$0xff]
        %v931 = vld [vmem:[#allocation2 + $0xe5] sm:$0xff]
        %v932 = vld [vmem:[#allocation2 + $0xed] sm:$0xff]
        %v933 = vld [vmem:[#allocation2 + $0xf5] sm:$0xff]
        %v934 = vld [vmem:[#allocation2 + $0xfd] sm:$0xff]
        %v935 = vld [vmem:[%s3 + $0x5] sm:$0x1]
        %v936 = vlaneseq
        %v937 = vshrl.u32 %v936, 7
        %v938 = vsub.s32 0, %v937
        %v939 = vrot.slane %v935, %v938
        %v940 = vmul.f32 %v903, %v939
        %v941 = vmul.f32 %v904, %v939
        %v942 = vmul.f32 %v905, %v939
        %v943 = vmul.f32 %v906, %v939
        %v944 = vmul.f32 %v907, %v939
        %v945 = vmul.f32 %v908, %v939
        %v946 = vmul.f32 %v909, %v939
        %v947 = vmul.f32 %v910, %v939
        %v948 = vmul.f32 %v911, %v939
        %v949 = vmul.f32 %v912, %v939
        %v950 = vmul.f32 %v913, %v939
        %v951 = vmul.f32 %v914, %v939
        %v952 = vmul.f32 %v915, %v939
        %v953 = vmul.f32 %v916, %v939
        %v954 = vmul.f32 %v917, %v939
        %v955 = vmul.f32 %v918, %v939
        %v956 = vmul.f32 %v919, %v939
        %v957 = vmul.f32 %v920, %v939
        %v958 = vmul.f32 %v921, %v939
        %v959 = vmul.f32 %v922, %v939
        %v960 = vmul.f32 %v923, %v939
        %v961 = vmul.f32 %v924, %v939
        %v962 = vmul.f32 %v925, %v939
        %v963 = vmul.f32 %v926, %v939
        %v964 = vmul.f32 %v927, %v939
        %v965 = vmul.f32 %v928, %v939
        %v966 = vmul.f32 %v929, %v939
        %v967 = vmul.f32 %v930, %v939
        %v968 = vmul.f32 %v931, %v939
        %v969 = vmul.f32 %v932, %v939
        %v970 = vmul.f32 %v933, %v939
        %v971 = vmul.f32 %v934, %v939
        %v972 = vadd.f32 %v871, %v940
        %v973 = vadd.f32 %v872, %v941
        %v974 = vadd.f32 %v873, %v942
        %v975 = vadd.f32 %v874, %v943
        %v976 = vadd.f32 %v875, %v944
        %v977 = vadd.f32 %v876, %v945
        %v978 = vadd.f32 %v877, %v946
        %v979 = vadd.f32 %v878, %v947
        %v980 = vadd.f32 %v879, %v948
        %v981 = vadd.f32 %v880, %v949
        %v982 = vadd.f32 %v881, %v950
        %v983 = vadd.f32 %v882, %v951
        %v984 = vadd.f32 %v883, %v952
        %v985 = vadd.f32 %v884, %v953
        %v986 = vadd.f32 %v885, %v954
        %v987 = vadd.f32 %v886, %v955
        %v988 = vadd.f32 %v887, %v956
        %v989 = vadd.f32 %v888, %v957
        %v990 = vadd.f32 %v889, %v958
        %v991 = vadd.f32 %v890, %v959
        %v992 = vadd.f32 %v891, %v960
        %v993 = vadd.f32 %v892, %v961
        %v994 = vadd.f32 %v893, %v962
        %v995 = vadd.f32 %v894, %v963
        %v996 = vadd.f32 %v895, %v964
        %v997 = vadd.f32 %v896, %v965
        %v998 = vadd.f32 %v897, %v966
        %v999 = vadd.f32 %v898, %v967
        %v1000 = vadd.f32 %v899, %v968
        %v1001 = vadd.f32 %v900, %v969
        %v1002 = vadd.f32 %v901, %v970
        %v1003 = vadd.f32 %v902, %v971
        %v1004 = vld [vmem:[#allocation2 + $0x6] sm:$0xff]
        %v1005 = vld [vmem:[#allocation2 + $0xe] sm:$0xff]
        %v1006 = vld [vmem:[#allocation2 + $0x16] sm:$0xff]
        %v1007 = vld [vmem:[#allocation2 + $0x1e] sm:$0xff]
        %v1008 = vld [vmem:[#allocation2 + $0x26] sm:$0xff]
        %v1009 = vld [vmem:[#allocation2 + $0x2e] sm:$0xff]
        %v1010 = vld [vmem:[#allocation2 + $0x36] sm:$0xff]
        %v1011 = vld [vmem:[#allocation2 + $0x3e] sm:$0xff]
        %v1012 = vld [vmem:[#allocation2 + $0x46] sm:$0xff]
        %v1013 = vld [vmem:[#allocation2 + $0x4e] sm:$0xff]
        %v1014 = vld [vmem:[#allocation2 + $0x56] sm:$0xff]
        %v1015 = vld [vmem:[#allocation2 + $0x5e] sm:$0xff]
        %v1016 = vld [vmem:[#allocation2 + $0x66] sm:$0xff]
        %v1017 = vld [vmem:[#allocation2 + $0x6e] sm:$0xff]
        %v1018 = vld [vmem:[#allocation2 + $0x76] sm:$0xff]
        %v1019 = vld [vmem:[#allocation2 + $0x7e] sm:$0xff]
        %v1020 = vld [vmem:[#allocation2 + $0x86] sm:$0xff]
        %v1021 = vld [vmem:[#allocation2 + $0x8e] sm:$0xff]
        %v1022 = vld [vmem:[#allocation2 + $0x96] sm:$0xff]
        %v1023 = vld [vmem:[#allocation2 + $0x9e] sm:$0xff]
        %v1024 = vld [vmem:[#allocation2 + $0xa6] sm:$0xff]
        %v1025 = vld [vmem:[#allocation2 + $0xae] sm:$0xff]
        %v1026 = vld [vmem:[#allocation2 + $0xb6] sm:$0xff]
        %v1027 = vld [vmem:[#allocation2 + $0xbe] sm:$0xff]
        %v1028 = vld [vmem:[#allocation2 + $0xc6] sm:$0xff]
        %v1029 = vld [vmem:[#allocation2 + $0xce] sm:$0xff]
        %v1030 = vld [vmem:[#allocation2 + $0xd6] sm:$0xff]
        %v1031 = vld [vmem:[#allocation2 + $0xde] sm:$0xff]
        %v1032 = vld [vmem:[#allocation2 + $0xe6] sm:$0xff]
        %v1033 = vld [vmem:[#allocation2 + $0xee] sm:$0xff]
        %v1034 = vld [vmem:[#allocation2 + $0xf6] sm:$0xff]
        %v1035 = vld [vmem:[#allocation2 + $0xfe] sm:$0xff]
        %v1036 = vld [vmem:[%s3 + $0x6] sm:$0x1]
        %v1037 = vlaneseq
        %v1038 = vshrl.u32 %v1037, 7
        %v1039 = vsub.s32 0, %v1038
        %v1040 = vrot.slane %v1036, %v1039
        %v1041 = vmul.f32 %v1004, %v1040
        %v1042 = vmul.f32 %v1005, %v1040
        %v1043 = vmul.f32 %v1006, %v1040
        %v1044 = vmul.f32 %v1007, %v1040
        %v1045 = vmul.f32 %v1008, %v1040
        %v1046 = vmul.f32 %v1009, %v1040
        %v1047 = vmul.f32 %v1010, %v1040
        %v1048 = vmul.f32 %v1011, %v1040
        %v1049 = vmul.f32 %v1012, %v1040
        %v1050 = vmul.f32 %v1013, %v1040
        %v1051 = vmul.f32 %v1014, %v1040
        %v1052 = vmul.f32 %v1015, %v1040
        %v1053 = vmul.f32 %v1016, %v1040
        %v1054 = vmul.f32 %v1017, %v1040
        %v1055 = vmul.f32 %v1018, %v1040
        %v1056 = vmul.f32 %v1019, %v1040
        %v1057 = vmul.f32 %v1020, %v1040
        %v1058 = vmul.f32 %v1021, %v1040
        %v1059 = vmul.f32 %v1022, %v1040
        %v1060 = vmul.f32 %v1023, %v1040
        %v1061 = vmul.f32 %v1024, %v1040
        %v1062 = vmul.f32 %v1025, %v1040
        %v1063 = vmul.f32 %v1026, %v1040
        %v1064 = vmul.f32 %v1027, %v1040
        %v1065 = vmul.f32 %v1028, %v1040
        %v1066 = vmul.f32 %v1029, %v1040
        %v1067 = vmul.f32 %v1030, %v1040
        %v1068 = vmul.f32 %v1031, %v1040
        %v1069 = vmul.f32 %v1032, %v1040
        %v1070 = vmul.f32 %v1033, %v1040
        %v1071 = vmul.f32 %v1034, %v1040
        %v1072 = vmul.f32 %v1035, %v1040
        %v1073 = vadd.f32 %v972, %v1041
        %v1074 = vadd.f32 %v973, %v1042
        %v1075 = vadd.f32 %v974, %v1043
        %v1076 = vadd.f32 %v975, %v1044
        %v1077 = vadd.f32 %v976, %v1045
        %v1078 = vadd.f32 %v977, %v1046
        %v1079 = vadd.f32 %v978, %v1047
        %v1080 = vadd.f32 %v979, %v1048
        %v1081 = vadd.f32 %v980, %v1049
        %v1082 = vadd.f32 %v981, %v1050
        %v1083 = vadd.f32 %v982, %v1051
        %v1084 = vadd.f32 %v983, %v1052
        %v1085 = vadd.f32 %v984, %v1053
        %v1086 = vadd.f32 %v985, %v1054
        %v1087 = vadd.f32 %v986, %v1055
        %v1088 = vadd.f32 %v987, %v1056
        %v1089 = vadd.f32 %v988, %v1057
        %v1090 = vadd.f32 %v989, %v1058
        %v1091 = vadd.f32 %v990, %v1059
        %v1092 = vadd.f32 %v991, %v1060
        %v1093 = vadd.f32 %v992, %v1061
        %v1094 = vadd.f32 %v993, %v1062
        %v1095 = vadd.f32 %v994, %v1063
        %v1096 = vadd.f32 %v995, %v1064
        %v1097 = vadd.f32 %v996, %v1065
        %v1098 = vadd.f32 %v997, %v1066
        %v1099 = vadd.f32 %v998, %v1067
        %v1100 = vadd.f32 %v999, %v1068
        %v1101 = vadd.f32 %v1000, %v1069
        %v1102 = vadd.f32 %v1001, %v1070
        %v1103 = vadd.f32 %v1002, %v1071
        %v1104 = vadd.f32 %v1003, %v1072
        %v1105 = vpack.c.bf16 %v1074, %v1073
        %v1106 = vpack.c.bf16 %v1076, %v1075
        %v1107 = vpack.c.bf16 %v1078, %v1077
        %v1108 = vpack.c.bf16 %v1080, %v1079
        %v1109 = vpack.c.bf16 %v1082, %v1081
        %v1110 = vpack.c.bf16 %v1084, %v1083
        %v1111 = vpack.c.bf16 %v1086, %v1085
        %v1112 = vpack.c.bf16 %v1088, %v1087
        %v1113 = vpack.c.bf16 %v1090, %v1089
        %v1114 = vpack.c.bf16 %v1092, %v1091
        %v1115 = vpack.c.bf16 %v1094, %v1093
        %v1116 = vpack.c.bf16 %v1096, %v1095
        %v1117 = vpack.c.bf16 %v1098, %v1097
        %v1118 = vpack.c.bf16 %v1100, %v1099
        %v1119 = vpack.c.bf16 %v1102, %v1101
        %v1120 = vpack.c.bf16 %v1104, %v1103
        %v1121 = vld [vmem:[#allocation6] sm:$0xf]
        %v1122 = vld [vmem:[#allocation6 + $0x4] sm:$0xf]
        %v1123 = vld [vmem:[#allocation6 + $0x8] sm:$0xf]
        %v1124 = vld [vmem:[#allocation6 + $0xc] sm:$0xf]
        %v1125 = vld [vmem:[#allocation6 + $0x10] sm:$0xf]
        %v1126 = vld [vmem:[#allocation6 + $0x14] sm:$0xf]
        %v1127 = vld [vmem:[#allocation6 + $0x18] sm:$0xf]
        %v1128 = vld [vmem:[#allocation6 + $0x1c] sm:$0xf]
        %v1129 = vld [vmem:[#allocation6 + $0x20] sm:$0xf]
        %v1130 = vld [vmem:[#allocation6 + $0x24] sm:$0xf]
        %v1131 = vld [vmem:[#allocation6 + $0x28] sm:$0xf]
        %v1132 = vld [vmem:[#allocation6 + $0x2c] sm:$0xf]
        %v1133 = vld [vmem:[#allocation6 + $0x30] sm:$0xf]
        %v1134 = vld [vmem:[#allocation6 + $0x34] sm:$0xf]
        %v1135 = vld [vmem:[#allocation6 + $0x38] sm:$0xf]
        %v1136 = vld [vmem:[#allocation6 + $0x3c] sm:$0xf]
        %v1137 = vld [vmem:[%s5] sm:$0x1]
        %v1139 = vlaneseq
        %v1140 = vshrl.u32 %v1139, 7
        %v1141 = vsub.s32 0, %v1140
        %v1142 = vrot.slane %v1137, %v1141
        %v1160 = vunpack.c.l.b16 %v1121
        %v1161 = vunpack.c.l.b16 %v1122
        %v1162 = vunpack.c.l.b16 %v1123
        %v1163 = vunpack.c.l.b16 %v1124
        %v1164 = vunpack.c.l.b16 %v1125
        %v1165 = vunpack.c.l.b16 %v1126
        %v1166 = vunpack.c.l.b16 %v1127
        %v1167 = vunpack.c.l.b16 %v1128
        %v1168 = vunpack.c.l.b16 %v1129
        %v1169 = vunpack.c.l.b16 %v1130
        %v1170 = vunpack.c.l.b16 %v1131
        %v1171 = vunpack.c.l.b16 %v1132
        %v1172 = vunpack.c.l.b16 %v1133
        %v1173 = vunpack.c.l.b16 %v1134
        %v1174 = vunpack.c.l.b16 %v1135
        %v1175 = vunpack.c.l.b16 %v1136
        %v1176 = vpack.c.b16 %v1161, %v1160
        %v1177 = vpack.c.b16 %v1163, %v1162
        %v1178 = vpack.c.b16 %v1165, %v1164
        %v1179 = vpack.c.b16 %v1167, %v1166
        %v1180 = vpack.c.b16 %v1169, %v1168
        %v1181 = vpack.c.b16 %v1171, %v1170
        %v1182 = vpack.c.b16 %v1173, %v1172
        %v1183 = vpack.c.b16 %v1175, %v1174
        %1192 = vmatprep.subr.bf16.mxu0 0
        %1193 = vmatpush1.bf16.msra.mxu0 %v1176
        %1194 = vmatprep.subr.bf16.mxu0 0
        %1195 = vmatpush1.bf16.msra.mxu0 %v1177
        %1196 = vmatprep.subr.bf16.mxu0 0
        %1197 = vmatpush1.bf16.msra.mxu0 %v1178
        %1198 = vmatprep.subr.bf16.mxu0 0
        %1199 = vmatpush1.bf16.msra.mxu0 %v1179
        %1200 = vmatprep.subr.bf16.mxu0 0
        %1201 = vmatpush1.bf16.msra.mxu0 %v1180
        %1202 = vmatprep.subr.bf16.mxu0 0
        %1203 = vmatpush1.bf16.msra.mxu0 %v1181
        %1204 = vmatprep.subr.bf16.mxu0 0
        %1205 = vmatpush1.bf16.msra.mxu0 %v1182
        %1206 = vmatprep.subr.bf16.mxu0 0
        %1207 = vmatpush1.bf16.msra.mxu0 %v1183
        %1208 = vmatprep.subr.bf16.mxu0 0
        %1209 = vmatpush1.bf16.msra.mxu0 0
        %1210 = vmatprep.subr.bf16.mxu0 0
        %1211 = vmatpush1.bf16.msra.mxu0 0
        %1212 = vmatprep.subr.bf16.mxu0 0
        %1213 = vmatpush1.bf16.msra.mxu0 0
        %1214 = vmatprep.subr.bf16.mxu0 0
        %1215 = vmatpush1.bf16.msra.mxu0 0
        %1216 = vmatprep.subr.bf16.mxu0 0
        %1217 = vmatpush1.bf16.msra.mxu0 0
        %1218 = vmatprep.subr.bf16.mxu0 0
        %1219 = vmatpush1.bf16.msra.mxu0 0
        %1220 = vmatprep.subr.bf16.mxu0 0
        %1221 = vmatpush1.bf16.msra.mxu0 0
        %1222 = vmatprep.subr.bf16.mxu0 0
        %1223 = vmatpush1.bf16.msra.mxu0 0
        %1224 = vmatprep.mubr.bf16.mxu0 0
        %1225 = vmatmul.mubr.bf16.gmra.mrb[0].mxu0 %v1105
        %v1226 = vpop.f32.mrb[0].mxu0
        %v1227 = vadd.f32 %v1142, %v1226
        %v1228 = vpop.f32.mrb[0].mxu0
        %v1229 = vpop.f32.mrb[0].mxu0
        %v1230 = vadd.f32 %v1142, %v1229
        %v1231 = vpop.f32.mrb[0].mxu0
        %1232 = vmatprep.mubr.bf16.mxu0 0
        %1233 = vmatmul.mubr.bf16.gmra.mrb[0].mxu0 %v1106
        %v1234 = vpop.f32.mrb[0].mxu0
        %v1235 = vadd.f32 %v1142, %v1234
        %v1236 = vpop.f32.mrb[0].mxu0
        %v1237 = vpop.f32.mrb[0].mxu0
        %v1238 = vadd.f32 %v1142, %v1237
        %v1239 = vpop.f32.mrb[0].mxu0
        %1240 = vmatprep.mubr.bf16.mxu0 0
        %1241 = vmatmul.mubr.bf16.gmra.mrb[0].mxu0 %v1107
        %v1242 = vpop.f32.mrb[0].mxu0
        %v1243 = vadd.f32 %v1142, %v1242
        %v1244 = vpop.f32.mrb[0].mxu0
        %v1245 = vpop.f32.mrb[0].mxu0
        %v1246 = vadd.f32 %v1142, %v1245
        %v1247 = vpop.f32.mrb[0].mxu0
        %1248 = vmatprep.mubr.bf16.mxu0 0
        %1249 = vmatmul.mubr.bf16.gmra.mrb[0].mxu0 %v1108
        %v1250 = vpop.f32.mrb[0].mxu0
        %v1251 = vadd.f32 %v1142, %v1250
        %v1252 = vpop.f32.mrb[0].mxu0
        %v1253 = vpop.f32.mrb[0].mxu0
        %v1254 = vadd.f32 %v1142, %v1253
        %v1255 = vpop.f32.mrb[0].mxu0
        %1256 = vmatprep.mubr.bf16.mxu0 0
        %1257 = vmatmul.mubr.bf16.gmra.mrb[0].mxu0 %v1109
        %v1258 = vpop.f32.mrb[0].mxu0
        %v1259 = vadd.f32 %v1142, %v1258
        %v1260 = vpop.f32.mrb[0].mxu0
        %v1261 = vpop.f32.mrb[0].mxu0
        %v1262 = vadd.f32 %v1142, %v1261
        %v1263 = vpop.f32.mrb[0].mxu0
        %1264 = vmatprep.mubr.bf16.mxu0 0
        %1265 = vmatmul.mubr.bf16.gmra.mrb[0].mxu0 %v1110
        %v1266 = vpop.f32.mrb[0].mxu0
        %v1267 = vadd.f32 %v1142, %v1266
        %v1268 = vpop.f32.mrb[0].mxu0
        %v1269 = vpop.f32.mrb[0].mxu0
        %v1270 = vadd.f32 %v1142, %v1269
        %v1271 = vpop.f32.mrb[0].mxu0
        %1272 = vmatprep.mubr.bf16.mxu0 0
        %1273 = vmatmul.mubr.bf16.gmra.mrb[0].mxu0 %v1111
        %v1274 = vpop.f32.mrb[0].mxu0
        %v1275 = vadd.f32 %v1142, %v1274
        %v1276 = vpop.f32.mrb[0].mxu0
        %v1277 = vpop.f32.mrb[0].mxu0
        %v1278 = vadd.f32 %v1142, %v1277
        %v1279 = vpop.f32.mrb[0].mxu0
        %1280 = vmatprep.mubr.bf16.mxu0 0
        %1281 = vmatmul.mubr.bf16.gmra.mrb[0].mxu0 %v1112
        %v1282 = vpop.f32.mrb[0].mxu0
        %v1283 = vadd.f32 %v1142, %v1282
        %v1284 = vpop.f32.mrb[0].mxu0
        %v1285 = vpop.f32.mrb[0].mxu0
        %v1286 = vadd.f32 %v1142, %v1285
        %v1287 = vpop.f32.mrb[0].mxu0
        %1288 = vmatprep.mubr.bf16.mxu0 0
        %1289 = vmatmul.mubr.bf16.gmra.mrb[0].mxu0 %v1113
        %v1290 = vpop.f32.mrb[0].mxu0
        %v1291 = vadd.f32 %v1142, %v1290
        %v1292 = vpop.f32.mrb[0].mxu0
        %v1293 = vpop.f32.mrb[0].mxu0
        %v1294 = vadd.f32 %v1142, %v1293
        %v1295 = vpop.f32.mrb[0].mxu0
        %1296 = vmatprep.mubr.bf16.mxu0 0
        %1297 = vmatmul.mubr.bf16.gmra.mrb[0].mxu0 %v1114
        %v1298 = vpop.f32.mrb[0].mxu0
        %v1299 = vadd.f32 %v1142, %v1298
        %v1300 = vpop.f32.mrb[0].mxu0
        %v1301 = vpop.f32.mrb[0].mxu0
        %v1302 = vadd.f32 %v1142, %v1301
        %v1303 = vpop.f32.mrb[0].mxu0
        %1304 = vmatprep.mubr.bf16.mxu0 0
        %1305 = vmatmul.mubr.bf16.gmra.mrb[0].mxu0 %v1115
        %v1306 = vpop.f32.mrb[0].mxu0
        %v1307 = vadd.f32 %v1142, %v1306
        %v1308 = vpop.f32.mrb[0].mxu0
        %v1309 = vpop.f32.mrb[0].mxu0
        %v1310 = vadd.f32 %v1142, %v1309
        %v1311 = vpop.f32.mrb[0].mxu0
        %1312 = vmatprep.mubr.bf16.mxu0 0
        %1313 = vmatmul.mubr.bf16.gmra.mrb[0].mxu0 %v1116
        %v1314 = vpop.f32.mrb[0].mxu0
        %v1315 = vadd.f32 %v1142, %v1314
        %v1316 = vpop.f32.mrb[0].mxu0
        %v1317 = vpop.f32.mrb[0].mxu0
        %v1318 = vadd.f32 %v1142, %v1317
        %v1319 = vpop.f32.mrb[0].mxu0
        %1320 = vmatprep.mubr.bf16.mxu0 0
        %1321 = vmatmul.mubr.bf16.gmra.mrb[0].mxu0 %v1117
        %v1322 = vpop.f32.mrb[0].mxu0
        %v1323 = vadd.f32 %v1142, %v1322
        %v1324 = vpop.f32.mrb[0].mxu0
        %v1325 = vpop.f32.mrb[0].mxu0
        %v1326 = vadd.f32 %v1142, %v1325
        %v1327 = vpop.f32.mrb[0].mxu0
        %1328 = vmatprep.mubr.bf16.mxu0 0
        %1329 = vmatmul.mubr.bf16.gmra.mrb[0].mxu0 %v1118
        %v1330 = vpop.f32.mrb[0].mxu0
        %v1331 = vadd.f32 %v1142, %v1330
        %v1332 = vpop.f32.mrb[0].mxu0
        %v1333 = vpop.f32.mrb[0].mxu0
        %v1334 = vadd.f32 %v1142, %v1333
        %v1335 = vpop.f32.mrb[0].mxu0
        %1336 = vmatprep.mubr.bf16.mxu0 0
        %1337 = vmatmul.mubr.bf16.gmra.mrb[0].mxu0 %v1119
        %v1338 = vpop.f32.mrb[0].mxu0
        %v1339 = vadd.f32 %v1142, %v1338
        %v1340 = vpop.f32.mrb[0].mxu0
        %v1341 = vpop.f32.mrb[0].mxu0
        %v1342 = vadd.f32 %v1142, %v1341
        %v1343 = vpop.f32.mrb[0].mxu0
        %1344 = vmatprep.mubr.bf16.mxu0 0
        %1345 = vmatmul.mubr.bf16.gmra.mrb[0].mxu0 %v1120
        %v1346 = vpop.f32.mrb[0].mxu0
        %v1347 = vadd.f32 %v1142, %v1346
        %v1348 = vpop.f32.mrb[0].mxu0
        %v1349 = vpop.f32.mrb[0].mxu0
        %v1350 = vadd.f32 %v1142, %v1349
        %v1351 = vpop.f32.mrb[0].mxu0
        %1352 = vdwg.mxu0
        %v1353 = vadd.f32 %v362, %v1227
        %v1354 = vadd.f32 %v363, %v1230
        %v1355 = vadd.f32 %v364, %v1235
        %v1356 = vadd.f32 %v365, %v1238
        %v1357 = vadd.f32 %v366, %v1243
        %v1358 = vadd.f32 %v367, %v1246
        %v1359 = vadd.f32 %v368, %v1251
        %v1360 = vadd.f32 %v369, %v1254
        %v1361 = vadd.f32 %v370, %v1259
        %v1362 = vadd.f32 %v371, %v1262
        %v1363 = vadd.f32 %v372, %v1267
        %v1364 = vadd.f32 %v373, %v1270
        %v1365 = vadd.f32 %v374, %v1275
        %v1366 = vadd.f32 %v375, %v1278
        %v1367 = vadd.f32 %v376, %v1283
        %v1368 = vadd.f32 %v377, %v1286
        %v1369 = vadd.f32 %v378, %v1291
        %v1370 = vadd.f32 %v379, %v1294
        %v1371 = vadd.f32 %v380, %v1299
        %v1372 = vadd.f32 %v381, %v1302
        %v1373 = vadd.f32 %v382, %v1307
        %v1374 = vadd.f32 %v383, %v1310
        %v1375 = vadd.f32 %v384, %v1315
        %v1376 = vadd.f32 %v385, %v1318
        %v1377 = vadd.f32 %v386, %v1323
        %v1378 = vadd.f32 %v387, %v1326
        %v1379 = vadd.f32 %v388, %v1331
        %v1380 = vadd.f32 %v389, %v1334
        %v1381 = vadd.f32 %v390, %v1339
        %v1382 = vadd.f32 %v391, %v1342
        %v1383 = vadd.f32 %v392, %v1347
        %v1384 = vadd.f32 %v393, %v1350
        %v1385 = vmax.f32 %v1353, 0.0
        %v1386 = vmax.f32 %v1354, 0.0
        %v1387 = vmax.f32 %v1355, 0.0
        %v1388 = vmax.f32 %v1356, 0.0
        %v1389 = vmax.f32 %v1357, 0.0
        %v1390 = vmax.f32 %v1358, 0.0
        %v1391 = vmax.f32 %v1359, 0.0
        %v1392 = vmax.f32 %v1360, 0.0
        %v1393 = vmax.f32 %v1361, 0.0
        %v1394 = vmax.f32 %v1362, 0.0
        %v1395 = vmax.f32 %v1363, 0.0
        %v1396 = vmax.f32 %v1364, 0.0
        %v1397 = vmax.f32 %v1365, 0.0
        %v1398 = vmax.f32 %v1366, 0.0
        %v1399 = vmax.f32 %v1367, 0.0
        %v1400 = vmax.f32 %v1368, 0.0
        %v1401 = vmax.f32 %v1369, 0.0
        %v1402 = vmax.f32 %v1370, 0.0
        %v1403 = vmax.f32 %v1371, 0.0
        %v1404 = vmax.f32 %v1372, 0.0
        %v1405 = vmax.f32 %v1373, 0.0
        %v1406 = vmax.f32 %v1374, 0.0
        %v1407 = vmax.f32 %v1375, 0.0
        %v1408 = vmax.f32 %v1376, 0.0
        %v1409 = vmax.f32 %v1377, 0.0
        %v1410 = vmax.f32 %v1378, 0.0
        %v1411 = vmax.f32 %v1379, 0.0
        %v1412 = vmax.f32 %v1380, 0.0
        %v1413 = vmax.f32 %v1381, 0.0
        %v1414 = vmax.f32 %v1382, 0.0
        %v1415 = vmax.f32 %v1383, 0.0
        %v1416 = vmax.f32 %v1384, 0.0
        %1417 = vst [vmem:[%s344] sm:$0xff] %v1385
        %1418 = vst [vmem:[%s344 + $0x8] sm:$0xff] %v1386
        %1419 = vst [vmem:[%s344 + $0x10] sm:$0xff] %v1387
        %1420 = vst [vmem:[%s344 + $0x18] sm:$0xff] %v1388
        %1421 = vst [vmem:[%s344 + $0x20] sm:$0xff] %v1389
        %1422 = vst [vmem:[%s344 + $0x28] sm:$0xff] %v1390
        %1423 = vst [vmem:[%s344 + $0x30] sm:$0xff] %v1391
        %1424 = vst [vmem:[%s344 + $0x38] sm:$0xff] %v1392
        %1425 = vst [vmem:[%s344 + $0x40] sm:$0xff] %v1393
        %1426 = vst [vmem:[%s344 + $0x48] sm:$0xff] %v1394
        %1427 = vst [vmem:[%s344 + $0x50] sm:$0xff] %v1395
        %1428 = vst [vmem:[%s344 + $0x58] sm:$0xff] %v1396
        %1429 = vst [vmem:[%s344 + $0x60] sm:$0xff] %v1397
        %1430 = vst [vmem:[%s344 + $0x68] sm:$0xff] %v1398
        %1431 = vst [vmem:[%s344 + $0x70] sm:$0xff] %v1399
        %1432 = vst [vmem:[%s344 + $0x78] sm:$0xff] %v1400
        %1433 = vst [vmem:[%s344 + $0x80] sm:$0xff] %v1401
        %1434 = vst [vmem:[%s344 + $0x88] sm:$0xff] %v1402
        %1435 = vst [vmem:[%s344 + $0x90] sm:$0xff] %v1403
        %1436 = vst [vmem:[%s344 + $0x98] sm:$0xff] %v1404
        %1437 = vst [vmem:[%s344 + $0xa0] sm:$0xff] %v1405
        %1438 = vst [vmem:[%s344 + $0xa8] sm:$0xff] %v1406
        %1439 = vst [vmem:[%s344 + $0xb0] sm:$0xff] %v1407
        %1440 = vst [vmem:[%s344 + $0xb8] sm:$0xff] %v1408
        %1441 = vst [vmem:[%s344 + $0xc0] sm:$0xff] %v1409
        %1442 = vst [vmem:[%s344 + $0xc8] sm:$0xff] %v1410
        %1443 = vst [vmem:[%s344 + $0xd0] sm:$0xff] %v1411
        %1444 = vst [vmem:[%s344 + $0xd8] sm:$0xff] %v1412
        %1445 = vst [vmem:[%s344 + $0xe0] sm:$0xff] %v1413
        %1446 = vst [vmem:[%s344 + $0xe8] sm:$0xff] %v1414
        %1447 = vst [vmem:[%s344 + $0xf0] sm:$0xff] %v1415
        %1448 = vst [vmem:[%s344 + $0xf8] sm:$0xff] %v1416
        %s1449 = sand.u32 %s193, 1
        %s1450 = scalar_lea.sflag [#allocation5], %s1449
        %s1451 = sand.u32 %s193, 1
        %s1452 = smul.addr %s1451, 256
        %s1453 = scalar_lea.vmem [#allocation8], %s1452
        // Predicated region
        $region53: #{tpu_custom_call.1} parent=43 // pred_check
          %p1454 = pneg %p203
        $region54: #{tpu_custom_call.1} parent=43 // pred_check_branch
          %1456 = sbr.rel (%p1454) target = $region56
        $region55: #{tpu_custom_call.1} parent=43 // pred_region
          %s1457 = smul.u32 32, %s29
          %s1459 = ssub.s32 4096, 4096
          %1460 = vsyncadd %s1450, %s1459
          %s1461 = smul.addr %s28, 32
          %s1462 = sadd.s32 %s1457, %s1461
          %s1463 = smul.addr %s1462, 128
          %s1464 = scalar_lea.hbm %s6, %s1463
          %s1465 = sshll.u32 %s1453, 4
          %s1466 = int_to_ptr.vmem [resolvable:$true] %s1465
          %1471 = dma.vmem_to_hbm [thread:$0]  %s1466, 4096, %s1464, %s1450, 128, 128, 8
        $region56: #{tpu_custom_call.1} parent=43 // pred_fallthru
          _
      $region44: #{tpu_custom_call.1} parent=5 // pred_fallthru
        _
      %p1472 = scmp.le.s32.totalorder 2, %s19
      // Predicated region
      $region57: #{tpu_custom_call.1} parent=5 // pred_check
        %p1473 = pneg %p1472
      $region58: #{tpu_custom_call.1} parent=5 // pred_check_branch
        %1475 = sbr.rel (%p1473) target = $region60
      $region59: #{tpu_custom_call.1} parent=5 // pred_region
        %s1476 = ssub.s32 %s19, 2
        // Predicated region
        $region61: #{tpu_custom_call.1} parent=59 // pred_check
          %p1477 = pneg %p209
        $region62: #{tpu_custom_call.1} parent=59 // pred_check_branch
          %1479 = sbr.rel (%p1477) target = $region64
        $region63: #{tpu_custom_call.1} parent=59 // pred_region
          %s1480 = sand.u32 %s194, 1
          %s1481 = scalar_lea.sflag [#allocation5], %s1480
          %s1482 = sand.u32 %s194, 1
          %s1483 = smul.addr %s1482, 256
          %s1484 = scalar_lea.vmem [#allocation8], %s1483
          %1485 = dma.done %s1481, 4096
        $region64: #{tpu_custom_call.1} parent=59 // pred_fallthru
          _
      $region60: #{tpu_custom_call.1} parent=5 // pred_fallthru
        _
    $region6: #{tpu_custom_call.1} parent=1 // loop_footer
      %s23 = sadd.s32 1, %s19
    $region7: #{tpu_custom_call.1} parent=1 // loop_footer_branch
      %18 = sbr.rel target = $region3
    $region8: #{tpu_custom_call.1} parent=1 // loop_exit
      _
    %1486 = vsyncpa [#allocation4], 1
    %s1487 = scalar_lea.sflag [#allocation4], 1
    %1488 = vsyncpa %s1487, 1
    %1489 = vsyncpa [#allocation7], 1
    %1490 = vsyncpa [#allocation5], 1
    %s1491 = scalar_lea.sflag [#allocation5], 1
    %1492 = vsyncpa %s1491, 1

</llo_original>
